<compile_context>
chip_gen: v5e
topology: v5e:2x2
jax: 0.10.0
libtpu: 0.0.40
codegen_flags: <defaults>
</compile_context>

<pallas_src>
import jax
import jax.numpy as jnp
from jax import lax
from jax.experimental import pallas as pl
from jax.experimental.pallas import tpu as pltpu

IN_DIM = 8
HIDDEN = 32
OUT_DIM = 1
NEG_SLOPE = 0.01  # nn.LeakyReLU default


def _leaky(x):
    return jnp.where(x > 0, x, NEG_SLOPE * x)


# ---------------------------------------------------------------------------
# Pallas kernel: whole Decoder forward for one batch tile, chunked over lanes.
# ---------------------------------------------------------------------------
def _make_decoder_kernel(tile, chunk):
    n_chunks = tile // chunk

    def decoder_kernel(x_ref, w0, b0, w1, b1, w2a, w2b, b2, w3c, b3, o_ref):
        # Weights / biases are tiny and grid-invariant: load once per grid step.
        W0, W1, W2a, W2b = w0[...], w1[...], w2a[...], w2b[...]      # bf16 [out, in]
        B0, B1, B2, B3 = b0[...], b1[...], b2[...], b3[...]          # f32  (out, 1)
        W3 = w3c[...]                                                # f32  (HIDDEN, 1)
        nt = (((1,), (1,)), ((), ()))   # contract x's last dim (MXU absorbs the transpose)

        def body(c, carry):
            s = pl.multiple_of(c * chunk, chunk)
            xb = x_ref[pl.ds(s, chunk), :].astype(jnp.bfloat16)      # (chunk, IN_DIM)

            # layer 0: weight-norm'd Linear(8->32) + LeakyReLU (+ Dropout == id in eval)
            # TODO(synk): training-mode nn.Dropout(p=0.1) omitted; eval-mode identity.
            h = _leaky(lax.dot_general(W0, xb, nt,
                                       preferred_element_type=jnp.float32) + B0)

            # layer 1: Linear(32->32) + LeakyReLU
            h = _leaky(jnp.dot(W1, h.astype(jnp.bfloat16),
                               preferred_element_type=jnp.float32) + B1)

            # layer 2: latent_in skip; concat([h, x]) @ W2 == W2a @ h + W2b @ x (no concat)
            h = _leaky(jnp.dot(W2a, h.astype(jnp.bfloat16),
                               preferred_element_type=jnp.float32)
                       + lax.dot_general(W2b, xb, nt,
                                         preferred_element_type=jnp.float32)
                       + B2)

            # layer 3: Linear(32->1) + Tanh on VPU/XLU (M=1 row would waste MXU pushes)
            y = jnp.sum(W3 * h, axis=0, keepdims=True) + B3          # (1, chunk) f32
            o_ref[:, pl.ds(s, chunk)] = jnp.tanh(y)
            return carry

        lax.fori_loop(0, n_chunks, body, 0, unroll=True)

    return decoder_kernel


# ---------------------------------------------------------------------------
# Wrapper: batch-major input, lane-dense feature-major output, resident weights.
# ---------------------------------------------------------------------------
def decoder_forward(x, kparams, *, tile=None):
    N, F = x.shape
    assert F == IN_DIM

    if tile is None:
        # >=2 grid steps whenever N >= 256 (v7x has 2 TensorCores), capped at 2048 lanes.
        tile = min(2048, max(256, 256 * pl.cdiv(pl.cdiv(N, 2), 256)))
    assert tile % 128 == 0
    # inner chunk: keep the (HIDDEN, chunk) f32 intermediates register-resident
    chunk = 512 if tile % 512 == 0 else (256 if tile % 256 == 0 else 128)

    n_pad = pl.cdiv(N, tile) * tile
    if n_pad != N:
        x = jnp.pad(x, ((0, n_pad - N), (0, 0)))      # zero-pad batch rows (no transpose)

    w0, b0, w1, b1, w2a, w2b, b2, w3c, b3 = kparams
    const = lambda i: (0, 0)                          # weights/biases stay resident
    grid = (n_pad // tile,)

    flops = 2 * n_pad * (2 * IN_DIM * HIDDEN + 2 * HIDDEN * HIDDEN + HIDDEN * OUT_DIM)
    bytes_accessed = (4 * n_pad * (IN_DIM + OUT_DIM)
                      + sum(int(a.size) * a.dtype.itemsize for a in kparams))

    out_fm = pl.pallas_call(
        _make_decoder_kernel(tile, chunk),
        out_shape=jax.ShapeDtypeStruct((OUT_DIM, n_pad), jnp.float32),
        grid=grid,
        in_specs=[
            pl.BlockSpec((tile, IN_DIM), lambda i: (i, 0)),
            pl.BlockSpec(w0.shape, const), pl.BlockSpec(b0.shape, const),
            pl.BlockSpec(w1.shape, const), pl.BlockSpec(b1.shape, const),
            pl.BlockSpec(w2a.shape, const), pl.BlockSpec(w2b.shape, const),
            pl.BlockSpec(b2.shape, const),
            pl.BlockSpec(w3c.shape, const), pl.BlockSpec(b3.shape, const),
        ],
        out_specs=pl.BlockSpec((OUT_DIM, tile), lambda i: (0, i)),
        compiler_params=pltpu.CompilerParams(dimension_semantics=("parallel",)),
        cost_estimate=pl.CostEstimate(flops=flops, transcendentals=n_pad,
                                      bytes_accessed=bytes_accessed),
    )(x, w0, b0, w1, b1, w2a, w2b, b2, w3c, b3)

    return out_fm[:, :N].T                            # (N, OUT_DIM); (1, N) transpose is tiny


# ---------------------------------------------------------------------------
# Parameter setup (glue): deterministic init + weight_norm fold, torch [out, in] layout.
# ---------------------------------------------------------------------------
def _weight_norm_effective(v, g):
    # nn.utils.weight_norm(dim=0) on Linear weight [out, in]: W[o,:] = g[o]*v[o,:]/||v[o,:]||
    norm = jnp.sqrt(jnp.sum(v * v, axis=1, keepdims=True))
    return g[:, None] * v / norm


def init_params(key):
    # f32 master parameters, torch [out, in] layout, weight_norm folded at init.
    # TODO(synk): if v/g are trained, re-fold the weight_norm outside the kernel each step.
    layer_dims = [(IN_DIM, HIDDEN), (HIDDEN, HIDDEN),
                  (HIDDEN + IN_DIM, HIDDEN), (HIDDEN, OUT_DIM)]
    params = []
    for din, dout in layer_dims:
        key, kv, kg, kb = jax.random.split(key, 4)
        v = jax.random.normal(kv, (dout, din), jnp.float32) * 0.1
        g = jax.random.uniform(kg, (dout,), jnp.float32, minval=0.5, maxval=1.5)
        b = jax.random.normal(kb, (dout,), jnp.float32) * 0.01
        params.append((_weight_norm_effective(v, g), b))
    return tuple(params)


def pack_params(params):
    # Kernel layout: bf16 MXU weights, f32 column biases, layer-2 weight split at the
    # concat boundary (concat([activation, input]) -> W2[:, :HIDDEN] acts on h,
    # W2[:, HIDDEN:] on the skip input), layer-3 weight as an f32 (HIDDEN, 1) column
    # for the VPU/XLU path.
    (w0, b0), (w1, b1), (w2, b2), (w3, b3) = params
    col = lambda b: b.reshape(-1, 1).astype(jnp.float32)
    bf = lambda w: w.astype(jnp.bfloat16)
    return (bf(w0), col(b0), bf(w1), col(b1),
            bf(w2[:, :HIDDEN]), bf(w2[:, HIDDEN:]), col(b2),
            w3.T.astype(jnp.float32), col(b3))


# ---------------------------------------------------------------------------
# Pure-JAX f32 reference (batch-major, original concat) for correctness.
# ---------------------------------------------------------------------------
def decoder_ref(x, params):
    (w0, b0), (w1, b1), (w2, b2), (w3, b3) = params
    h = _leaky(x @ w0.T + b0)
    h = _leaky(h @ w1.T + b1)
    h = jnp.concatenate([h, x], axis=-1)              # [activation, input]
    h = _leaky(h @ w2.T + b2)
    return jnp.tanh(h @ w3.T + b3)


if __name__ == "__main__":
    key = jax.random.PRNGKey(0)
    kp, kx = jax.random.split(key)
    params = init_params(kp)
    kparams = pack_params(params)

    # 2000 points -> tile=1024: 2 grid steps, 2 inner 512-lane chunks each, 48 rows of pad.
    N = 2000
    x = jax.random.normal(kx, (N, IN_DIM), jnp.float32)

    out = jax.block_until_ready(decoder_forward(x, kparams))
    ref = decoder_ref(x, params)

    assert out.shape == (N, OUT_DIM), out.shape
    err = float(jnp.max(jnp.abs(out - ref)))
    # bf16 MXU operands with f32 accumulation vs f32 reference: ~1e-2-level error post-tanh.
    assert jnp.allclose(out, ref, atol=4e-2, rtol=4e-2), err
    print("KERNEL_OK")
</pallas_src>

<mosaic_0001>
module attributes {stable_mosaic.version = 11 : i64} {
  func.func @decoder_kernel(%arg0: i32, %arg1: memref<1024x8xf32, #tpu.memory_space<vmem>>, %arg2: memref<32x8xbf16, #tpu.memory_space<vmem>>, %arg3: memref<32x1xf32, #tpu.memory_space<vmem>>, %arg4: memref<32x32xbf16, #tpu.memory_space<vmem>>, %arg5: memref<32x1xf32, #tpu.memory_space<vmem>>, %arg6: memref<32x32xbf16, #tpu.memory_space<vmem>>, %arg7: memref<32x8xbf16, #tpu.memory_space<vmem>>, %arg8: memref<32x1xf32, #tpu.memory_space<vmem>>, %arg9: memref<32x1xf32, #tpu.memory_space<vmem>>, %arg10: memref<1x1xf32, #tpu.memory_space<vmem>>, %arg11: memref<1x1024xf32, #tpu.memory_space<vmem>>) attributes {dimension_semantics = [#tpu.dimension_semantics<parallel>], iteration_bounds = array<i64: 2>, scalar_prefetch = 0 : i64, scratch_operands = 0 : i64, tpu.core_type = #tpu.core_type<tc>, window_params = [{transform_indices = @transform_0, window_bounds = array<i64: 1024, 8>}, {pipeline_mode = #tpu.pipeline_mode<synchronous>, transform_indices = @transform_1, window_bounds = array<i64: 32, 8>}, {pipeline_mode = #tpu.pipeline_mode<synchronous>, transform_indices = @transform_2, window_bounds = array<i64: 32, 1>}, {pipeline_mode = #tpu.pipeline_mode<synchronous>, transform_indices = @transform_3, window_bounds = array<i64: 32, 32>}, {pipeline_mode = #tpu.pipeline_mode<synchronous>, transform_indices = @transform_4, window_bounds = array<i64: 32, 1>}, {pipeline_mode = #tpu.pipeline_mode<synchronous>, transform_indices = @transform_5, window_bounds = array<i64: 32, 32>}, {pipeline_mode = #tpu.pipeline_mode<synchronous>, transform_indices = @transform_6, window_bounds = array<i64: 32, 8>}, {pipeline_mode = #tpu.pipeline_mode<synchronous>, transform_indices = @transform_7, window_bounds = array<i64: 32, 1>}, {pipeline_mode = #tpu.pipeline_mode<synchronous>, transform_indices = @transform_8, window_bounds = array<i64: 32, 1>}, {pipeline_mode = #tpu.pipeline_mode<synchronous>, transform_indices = @transform_9, window_bounds = array<i64: 1, 1>}, {transform_indices = @transform_10, window_bounds = array<i64: 1, 1024>}]} {
    %c0 = arith.constant 0 : index
    %c0_0 = arith.constant 0 : index
    %0 = vector.load %arg2[%c0, %c0_0] : memref<32x8xbf16, #tpu.memory_space<vmem>>, vector<32x8xbf16>
    %c0_1 = arith.constant 0 : index
    %c0_2 = arith.constant 0 : index
    %1 = vector.load %arg4[%c0_1, %c0_2] : memref<32x32xbf16, #tpu.memory_space<vmem>>, vector<32x32xbf16>
    %c0_3 = arith.constant 0 : index
    %c0_4 = arith.constant 0 : index
    %2 = vector.load %arg6[%c0_3, %c0_4] : memref<32x32xbf16, #tpu.memory_space<vmem>>, vector<32x32xbf16>
    %c0_5 = arith.constant 0 : index
    %c0_6 = arith.constant 0 : index
    %3 = vector.load %arg7[%c0_5, %c0_6] : memref<32x8xbf16, #tpu.memory_space<vmem>>, vector<32x8xbf16>
    %c0_7 = arith.constant 0 : index
    %c0_8 = arith.constant 0 : index
    %4 = vector.load %arg3[%c0_7, %c0_8] : memref<32x1xf32, #tpu.memory_space<vmem>>, vector<32x1xf32>
    %c0_9 = arith.constant 0 : index
    %c0_10 = arith.constant 0 : index
    %5 = vector.load %arg5[%c0_9, %c0_10] : memref<32x1xf32, #tpu.memory_space<vmem>>, vector<32x1xf32>
    %c0_11 = arith.constant 0 : index
    %c0_12 = arith.constant 0 : index
    %6 = vector.load %arg8[%c0_11, %c0_12] : memref<32x1xf32, #tpu.memory_space<vmem>>, vector<32x1xf32>
    %c0_13 = arith.constant 0 : index
    %c0_14 = arith.constant 0 : index
    %7 = vector.load %arg10[%c0_13, %c0_14] : memref<1x1xf32, #tpu.memory_space<vmem>>, vector<1x1xf32>
    %c0_15 = arith.constant 0 : index
    %c0_16 = arith.constant 0 : index
    %8 = vector.load %arg9[%c0_15, %c0_16] : memref<32x1xf32, #tpu.memory_space<vmem>>, vector<32x1xf32>
    %c0_i32 = arith.constant 0 : i32
    %c512_i32 = arith.constant 512 : i32
    %9 = arith.muli %c0_i32, %c512_i32 : i32
    %10 = tpu.assume_multiple %9, 512 : i32
    %11 = arith.index_cast %10 : i32 to index
    %c0_17 = arith.constant 0 : index
    %12 = vector.load %arg1[%11, %c0_17] : memref<1024x8xf32, #tpu.memory_space<vmem>>, vector<512x8xf32>
    %13 = arith.truncf %12 : vector<512x8xf32> to vector<512x8xbf16>
    %cst = arith.constant dense<0.000000e+00> : vector<32x512xf32>
    %14 = tpu.matmul %0, %13, %cst {dimension_numbers = #tpu.dot_dimension_numbers<[1], [1], [0], [0], [0, 0, 1, 0], [], []>} : vector<32x8xbf16>, vector<512x8xbf16>, vector<32x512xf32> -> vector<32x512xf32>
    %15 = vector.broadcast %4 : vector<32x1xf32> to vector<32x512xf32>
    %16 = arith.addf %14, %15 : vector<32x512xf32>
    %cst_18 = arith.constant 0.000000e+00 : f32
    %17 = vector.broadcast %cst_18 : f32 to vector<32x512xf32>
    %18 = arith.cmpf ogt, %16, %17 : vector<32x512xf32>
    %cst_19 = arith.constant 0.00999999977 : f32
    %19 = vector.broadcast %cst_19 : f32 to vector<32x512xf32>
    %20 = arith.mulf %19, %16 : vector<32x512xf32>
    %21 = arith.select %18, %16, %20 : vector<32x512xi1>, vector<32x512xf32>
    %22 = arith.truncf %21 : vector<32x512xf32> to vector<32x512xbf16>
    %cst_20 = arith.constant dense<0.000000e+00> : vector<32x512xf32>
    %23 = tpu.matmul %1, %22, %cst_20 {dimension_numbers = #tpu.dot_dimension_numbers<[1], [0], [0], [1], [0, 0, 1, 1], [], []>} : vector<32x32xbf16>, vector<32x512xbf16>, vector<32x512xf32> -> vector<32x512xf32>
    %24 = vector.broadcast %5 : vector<32x1xf32> to vector<32x512xf32>
    %25 = arith.addf %23, %24 : vector<32x512xf32>
    %cst_21 = arith.constant 0.000000e+00 : f32
    %26 = vector.broadcast %cst_21 : f32 to vector<32x512xf32>
    %27 = arith.cmpf ogt, %25, %26 : vector<32x512xf32>
    %cst_22 = arith.constant 0.00999999977 : f32
    %28 = vector.broadcast %cst_22 : f32 to vector<32x512xf32>
    %29 = arith.mulf %28, %25 : vector<32x512xf32>
    %30 = arith.select %27, %25, %29 : vector<32x512xi1>, vector<32x512xf32>
    %31 = arith.truncf %30 : vector<32x512xf32> to vector<32x512xbf16>
    %cst_23 = arith.constant dense<0.000000e+00> : vector<32x512xf32>
    %32 = tpu.matmul %2, %31, %cst_23 {dimension_numbers = #tpu.dot_dimension_numbers<[1], [0], [0], [1], [0, 0, 1, 1], [], []>} : vector<32x32xbf16>, vector<32x512xbf16>, vector<32x512xf32> -> vector<32x512xf32>
    %cst_24 = arith.constant dense<0.000000e+00> : vector<32x512xf32>
    %33 = tpu.matmul %3, %13, %cst_24 {dimension_numbers = #tpu.dot_dimension_numbers<[1], [1], [0], [0], [0, 0, 1, 0], [], []>} : vector<32x8xbf16>, vector<512x8xbf16>, vector<32x512xf32> -> vector<32x512xf32>
    %34 = arith.addf %32, %33 : vector<32x512xf32>
    %35 = vector.broadcast %6 : vector<32x1xf32> to vector<32x512xf32>
    %36 = arith.addf %34, %35 : vector<32x512xf32>
    %cst_25 = arith.constant 0.000000e+00 : f32
    %37 = vector.broadcast %cst_25 : f32 to vector<32x512xf32>
    %38 = arith.cmpf ogt, %36, %37 : vector<32x512xf32>
    %cst_26 = arith.constant 0.00999999977 : f32
    %39 = vector.broadcast %cst_26 : f32 to vector<32x512xf32>
    %40 = arith.mulf %39, %36 : vector<32x512xf32>
    %41 = arith.select %38, %36, %40 : vector<32x512xi1>, vector<32x512xf32>
    %42 = vector.broadcast %8 : vector<32x1xf32> to vector<32x512xf32>
    %43 = arith.mulf %42, %41 : vector<32x512xf32>
    %cst_27 = arith.constant dense<0.000000e+00> : vector<512xf32>
    %44 = vector.multi_reduction <add>, %43, %cst_27 [0] : vector<32x512xf32> to vector<512xf32>
    %45 = vector.shape_cast %44 : vector<512xf32> to vector<1x512xf32>
    %46 = vector.broadcast %7 : vector<1x1xf32> to vector<1x512xf32>
    %47 = arith.addf %45, %46 : vector<1x512xf32>
    %48 = math.tanh %47 : vector<1x512xf32>
    %c0_28 = arith.constant 0 : index
    %49 = arith.index_cast %10 : i32 to index
    %50 = vector.load %arg11[%c0_28, %49] : memref<1x1024xf32, #tpu.memory_space<vmem>>, vector<1x512xf32>
    tpu.vector_store %arg11[%c0_28, %49], %48 {strides = array<i32>} : memref<1x1024xf32, #tpu.memory_space<vmem>>, vector<1x512xf32>,
    %c1_i32 = arith.constant 1 : i32
    %c512_i32_29 = arith.constant 512 : i32
    %51 = arith.muli %c1_i32, %c512_i32_29 : i32
    %52 = tpu.assume_multiple %51, 512 : i32
    %53 = arith.index_cast %52 : i32 to index
    %c0_30 = arith.constant 0 : index
    %54 = vector.load %arg1[%53, %c0_30] : memref<1024x8xf32, #tpu.memory_space<vmem>>, vector<512x8xf32>
    %55 = arith.truncf %54 : vector<512x8xf32> to vector<512x8xbf16>
    %cst_31 = arith.constant dense<0.000000e+00> : vector<32x512xf32>
    %56 = tpu.matmul %0, %55, %cst_31 {dimension_numbers = #tpu.dot_dimension_numbers<[1], [1], [0], [0], [0, 0, 1, 0], [], []>} : vector<32x8xbf16>, vector<512x8xbf16>, vector<32x512xf32> -> vector<32x512xf32>
    %57 = vector.broadcast %4 : vector<32x1xf32> to vector<32x512xf32>
    %58 = arith.addf %56, %57 : vector<32x512xf32>
    %cst_32 = arith.constant 0.000000e+00 : f32
    %59 = vector.broadcast %cst_32 : f32 to vector<32x512xf32>
    %60 = arith.cmpf ogt, %58, %59 : vector<32x512xf32>
    %cst_33 = arith.constant 0.00999999977 : f32
    %61 = vector.broadcast %cst_33 : f32 to vector<32x512xf32>
    %62 = arith.mulf %61, %58 : vector<32x512xf32>
    %63 = arith.select %60, %58, %62 : vector<32x512xi1>, vector<32x512xf32>
    %64 = arith.truncf %63 : vector<32x512xf32> to vector<32x512xbf16>
    %cst_34 = arith.constant dense<0.000000e+00> : vector<32x512xf32>
    %65 = tpu.matmul %1, %64, %cst_34 {dimension_numbers = #tpu.dot_dimension_numbers<[1], [0], [0], [1], [0, 0, 1, 1], [], []>} : vector<32x32xbf16>, vector<32x512xbf16>, vector<32x512xf32> -> vector<32x512xf32>
    %66 = vector.broadcast %5 : vector<32x1xf32> to vector<32x512xf32>
    %67 = arith.addf %65, %66 : vector<32x512xf32>
    %cst_35 = arith.constant 0.000000e+00 : f32
    %68 = vector.broadcast %cst_35 : f32 to vector<32x512xf32>
    %69 = arith.cmpf ogt, %67, %68 : vector<32x512xf32>
    %cst_36 = arith.constant 0.00999999977 : f32
    %70 = vector.broadcast %cst_36 : f32 to vector<32x512xf32>
    %71 = arith.mulf %70, %67 : vector<32x512xf32>
    %72 = arith.select %69, %67, %71 : vector<32x512xi1>, vector<32x512xf32>
    %73 = arith.truncf %72 : vector<32x512xf32> to vector<32x512xbf16>
    %cst_37 = arith.constant dense<0.000000e+00> : vector<32x512xf32>
    %74 = tpu.matmul %2, %73, %cst_37 {dimension_numbers = #tpu.dot_dimension_numbers<[1], [0], [0], [1], [0, 0, 1, 1], [], []>} : vector<32x32xbf16>, vector<32x512xbf16>, vector<32x512xf32> -> vector<32x512xf32>
    %cst_38 = arith.constant dense<0.000000e+00> : vector<32x512xf32>
    %75 = tpu.matmul %3, %55, %cst_38 {dimension_numbers = #tpu.dot_dimension_numbers<[1], [1], [0], [0], [0, 0, 1, 0], [], []>} : vector<32x8xbf16>, vector<512x8xbf16>, vector<32x512xf32> -> vector<32x512xf32>
    %76 = arith.addf %74, %75 : vector<32x512xf32>
    %77 = vector.broadcast %6 : vector<32x1xf32> to vector<32x512xf32>
    %78 = arith.addf %76, %77 : vector<32x512xf32>
    %cst_39 = arith.constant 0.000000e+00 : f32
    %79 = vector.broadcast %cst_39 : f32 to vector<32x512xf32>
    %80 = arith.cmpf ogt, %78, %79 : vector<32x512xf32>
    %cst_40 = arith.constant 0.00999999977 : f32
    %81 = vector.broadcast %cst_40 : f32 to vector<32x512xf32>
    %82 = arith.mulf %81, %78 : vector<32x512xf32>
    %83 = arith.select %80, %78, %82 : vector<32x512xi1>, vector<32x512xf32>
    %84 = vector.broadcast %8 : vector<32x1xf32> to vector<32x512xf32>
    %85 = arith.mulf %84, %83 : vector<32x512xf32>
    %cst_41 = arith.constant dense<0.000000e+00> : vector<512xf32>
    %86 = vector.multi_reduction <add>, %85, %cst_41 [0] : vector<32x512xf32> to vector<512xf32>
    %87 = vector.shape_cast %86 : vector<512xf32> to vector<1x512xf32>
    %88 = vector.broadcast %7 : vector<1x1xf32> to vector<1x512xf32>
    %89 = arith.addf %87, %88 : vector<1x512xf32>
    %90 = math.tanh %89 : vector<1x512xf32>
    %c0_42 = arith.constant 0 : index
    %91 = arith.index_cast %52 : i32 to index
    %92 = vector.load %arg11[%c0_42, %91] : memref<1x1024xf32, #tpu.memory_space<vmem>>, vector<1x512xf32>
    tpu.vector_store %arg11[%c0_42, %91], %90 {strides = array<i32>} : memref<1x1024xf32, #tpu.memory_space<vmem>>, vector<1x512xf32>,
    %c2_i32 = arith.constant 2 : i32
    return
  }
  func.func @transform_0(%arg0: i32) -> (i32, i32) {
    %c0_i32 = arith.constant 0 : i32
    %c0_i32_0 = arith.constant 0 : i32
    return %arg0, %c0_i32 : i32, i32
  }
  func.func @transform_1(%arg0: i32) -> (i32, i32) {
    %c0_i32 = arith.constant 0 : i32
    %c0_i32_0 = arith.constant 0 : i32
    %c0_i32_1 = arith.constant 0 : i32
    return %c0_i32, %c0_i32_0 : i32, i32
  }
  func.func @transform_2(%arg0: i32) -> (i32, i32) {
    %c0_i32 = arith.constant 0 : i32
    %c0_i32_0 = arith.constant 0 : i32
    %c0_i32_1 = arith.constant 0 : i32
    return %c0_i32, %c0_i32_0 : i32, i32
  }
  func.func @transform_3(%arg0: i32) -> (i32, i32) {
    %c0_i32 = arith.constant 0 : i32
    %c0_i32_0 = arith.constant 0 : i32
    %c0_i32_1 = arith.constant 0 : i32
    return %c0_i32, %c0_i32_0 : i32, i32
  }
  func.func @transform_4(%arg0: i32) -> (i32, i32) {
    %c0_i32 = arith.constant 0 : i32
    %c0_i32_0 = arith.constant 0 : i32
    %c0_i32_1 = arith.constant 0 : i32
    return %c0_i32, %c0_i32_0 : i32, i32
  }
  func.func @transform_5(%arg0: i32) -> (i32, i32) {
    %c0_i32 = arith.constant 0 : i32
    %c0_i32_0 = arith.constant 0 : i32
    %c0_i32_1 = arith.constant 0 : i32
    return %c0_i32, %c0_i32_0 : i32, i32
  }
  func.func @transform_6(%arg0: i32) -> (i32, i32) {
    %c0_i32 = arith.constant 0 : i32
    %c0_i32_0 = arith.constant 0 : i32
    %c0_i32_1 = arith.constant 0 : i32
    return %c0_i32, %c0_i32_0 : i32, i32
  }
  func.func @transform_7(%arg0: i32) -> (i32, i32) {
    %c0_i32 = arith.constant 0 : i32
    %c0_i32_0 = arith.constant 0 : i32
    %c0_i32_1 = arith.constant 0 : i32
    return %c0_i32, %c0_i32_0 : i32, i32
  }
  func.func @transform_8(%arg0: i32) -> (i32, i32) {
    %c0_i32 = arith.constant 0 : i32
    %c0_i32_0 = arith.constant 0 : i32
    %c0_i32_1 = arith.constant 0 : i32
    return %c0_i32, %c0_i32_0 : i32, i32
  }
  func.func @transform_9(%arg0: i32) -> (i32, i32) {
    %c0_i32 = arith.constant 0 : i32
    %c0_i32_0 = arith.constant 0 : i32
    %c0_i32_1 = arith.constant 0 : i32
    return %c0_i32, %c0_i32_0 : i32, i32
  }
  func.func @transform_10(%arg0: i32) -> (i32, i32) {
    %c0_i32 = arith.constant 0 : i32
    %c0_i32_0 = arith.constant 0 : i32
    return %c0_i32, %arg0 : i32, i32
  }
}

</mosaic_0001>

<llo_original>
// kernel: tpu_custom_call.1
$region0: #{tpu_custom_call.1}
  #allocation0 [shape = 'u32[]', space=smem, size = 0x4, offset = 0x4, fixed_abs, tag = 'smem constant byte address 0x4 - core index']
  #allocation1 [shape = 'u32[72,128]{1,0:T(1,128)}', space=vmem, size = 0x9000, scoped, tag = 'internal scratch']
  #allocation2 [shape = 'f32[1,1]{1,0:T(1,128)S(1)}', space=vmem, size = 0x200, scoped, tag = 'scoped memory for tpu_custom_call.1']
  %s0 = inlined_call_operand.vmem [shape: f32[2048,8], index: 0, kind: input, shape index: {}]
  %s1 = inlined_call_operand.vmem [shape: bf16[32,8], index: 1, kind: input, shape index: {}]
  %s2 = inlined_call_operand.vmem [shape: f32[32,1], index: 2, kind: input, shape index: {}]
  %s3 = inlined_call_operand.vmem [shape: bf16[32,32], index: 3, kind: input, shape index: {}]
  %s4 = inlined_call_operand.vmem [shape: f32[32,1], index: 4, kind: input, shape index: {}]
  %s5 = inlined_call_operand.vmem [shape: bf16[32,32], index: 5, kind: input, shape index: {}]
  %s6 = inlined_call_operand.vmem [shape: bf16[32,8], index: 6, kind: input, shape index: {}]
  %s7 = inlined_call_operand.vmem [shape: f32[32,1], index: 7, kind: input, shape index: {}]
  %s8 = inlined_call_operand.vmem [shape: f32[32,1], index: 8, kind: input, shape index: {}]
  %s9 = inlined_call_operand.<no memory space> [shape: f32[1,1], index: 9, kind: input, shape index: {}]
  %s10 = inlined_call_operand.hbm [shape: f32[1,2048], index: 10, kind: output, shape index: {}]
  %s11 = sld [smem:[#allocation0]]
  $region73: #{tpu_custom_call.1} parent=0
    _
  %s13 = ssub.s32 1, %s11
  %s14 = scalar_select 0, %s13, %s11
  %v15 = vstv %s9
  %16 = vst [vmem:[#allocation2] sm:$0x1] %v15
  $region1: #{tpu_custom_call.1} parent=0
    #allocation3 [shape = 'u8[8192]{0}', space=vmem, size = 0x2000, scoped, tag = 'output window, operand 0']
    #allocation4 [shape = 's32[2]{0}', space=sflag, size = 0x8, scoped, tag = 'scoped memory for tpu_custom_call.1']
    %17 = vsyncpa [#allocation4], 0
    %s18 = scalar_lea.sflag [#allocation4], 1
    %19 = vsyncpa %s18, 0
    loop: start=0, step=1, limit=4
    $region2: #{tpu_custom_call.1} parent=1 // loop_pre_header
      _
    $region3: #{tpu_custom_call.1} parent=1 // loop_header
      %s21 = sphi 0, %s25
      %p22 = scmp.ge.s32.totalorder %s21, 4
      %s31 = sphi 0, %s33
      %s34 = sphi 0, %s31
      %s35 = sphi 0, %s34
      %s51 = sphi 0, %s35
      %s55 = sphi 0, %s55
      %s57 = sphi 0, %s55
      %s58 = sphi 0, %s57
      %s72 = sphi 0, %s58
      %s76 = sphi 0, %s76
      %s78 = sphi 0, %s76
      %s79 = sphi 0, %s78
      %s93 = sphi 0, %s79
      %s97 = sphi 0, %s97
      %s99 = sphi 0, %s97
      %s100 = sphi 0, %s99
      %s114 = sphi 0, %s100
      %s118 = sphi 0, %s118
      %s120 = sphi 0, %s118
      %s121 = sphi 0, %s120
      %s135 = sphi 0, %s121
      %s139 = sphi 0, %s139
      %s141 = sphi 0, %s139
      %s142 = sphi 0, %s141
      %s156 = sphi 0, %s142
      %s160 = sphi 0, %s160
      %s162 = sphi 0, %s160
      %s163 = sphi 0, %s162
      %s177 = sphi 0, %s163
      %s181 = sphi 0, %s181
      %s183 = sphi 0, %s181
      %s184 = sphi 0, %s183
      %s198 = sphi 0, %s184
      %s202 = sphi 0, %s202
      %s204 = sphi 0, %s202
      %s205 = sphi 0, %s204
      %s219 = sphi 0, %s205
      %s223 = sphi 0, %s223
      %s225 = sphi 0, %s223
      %s226 = sphi 0, %s225
      %s240 = sphi 0, %s226
      %s246 = sphi 0, %s248
      %s249 = sphi 0, %s246
      %s250 = sphi 0, %s249
      %s266 = sphi 0, %s250
    $region4: #{tpu_custom_call.1} parent=1 // loop_header_branch
      %24 = sbr.rel (%p22) target = $region8
    $region5: #{tpu_custom_call.1} parent=1 // loop_body
      %s26 = ssub.s32 %s21, 1
      %s27 = ssub.s32 %s21, 2
      %s28 = sadd.s32 %s21, 1
      %s29 = ssub.s32 %s21, %s28
      %p30 = scmp.eq.s32.totalorder %s29, 0
      %s32 = sadd.s32 %s31, 1
      %s33 = scalar_select %p30, %s31, %s32
      %p36 = pneg %p30
      %p37 = scmp.eq.s32.totalorder %s21, 1
      %p38 = por %p36, %p37
      %p39 = scmp.ne.s32.totalorder %s31, %s34
      %p40 = scmp.eq.s32.totalorder %s21, 0
      %p41 = por %p39, %p40
      %p42 = scmp.ne.s32.totalorder %s31, %s34
      %p43 = scmp.eq.s32.totalorder %s26, 1
      %p44 = por %p42, %p43
      %p45 = scmp.ne.s32.totalorder %s34, %s35
      %p46 = scmp.eq.s32.totalorder %s26, 0
      %p47 = por %p45, %p46
      %p48 = scmp.ne.s32.totalorder %s34, %s35
      %p49 = scmp.eq.s32.totalorder %s27, 1
      %p50 = por %p48, %p49
      %p52 = scmp.ne.s32.totalorder %s35, %s51
      %p53 = scmp.eq.s32.totalorder %s27, 0
      %p54 = por %p52, %p53
      %s56 = sadd.s32 %s55, 1
      %p59 = scmp.eq.s32.totalorder %s21, 1
      %p60 = scmp.ne.s32.totalorder %s55, %s57
      %p61 = scmp.eq.s32.totalorder %s21, 0
      %p62 = por %p60, %p61
      %p63 = scmp.ne.s32.totalorder %s55, %s57
      %p64 = scmp.eq.s32.totalorder %s26, 1
      %p65 = por %p63, %p64
      %p66 = scmp.ne.s32.totalorder %s57, %s58
      %p67 = scmp.eq.s32.totalorder %s26, 0
      %p68 = por %p66, %p67
      %p69 = scmp.ne.s32.totalorder %s57, %s58
      %p70 = scmp.eq.s32.totalorder %s27, 1
      %p71 = por %p69, %p70
      %p73 = scmp.ne.s32.totalorder %s58, %s72
      %p74 = scmp.eq.s32.totalorder %s27, 0
      %p75 = por %p73, %p74
      %s77 = sadd.s32 %s76, 1
      %p80 = scmp.eq.s32.totalorder %s21, 1
      %p81 = scmp.ne.s32.totalorder %s76, %s78
      %p82 = scmp.eq.s32.totalorder %s21, 0
      %p83 = por %p81, %p82
      %p84 = scmp.ne.s32.totalorder %s76, %s78
      %p85 = scmp.eq.s32.totalorder %s26, 1
      %p86 = por %p84, %p85
      %p87 = scmp.ne.s32.totalorder %s78, %s79
      %p88 = scmp.eq.s32.totalorder %s26, 0
      %p89 = por %p87, %p88
      %p90 = scmp.ne.s32.totalorder %s78, %s79
      %p91 = scmp.eq.s32.totalorder %s27, 1
      %p92 = por %p90, %p91
      %p94 = scmp.ne.s32.totalorder %s79, %s93
      %p95 = scmp.eq.s32.totalorder %s27, 0
      %p96 = por %p94, %p95
      %s98 = sadd.s32 %s97, 1
      %p101 = scmp.eq.s32.totalorder %s21, 1
      %p102 = scmp.ne.s32.totalorder %s97, %s99
      %p103 = scmp.eq.s32.totalorder %s21, 0
      %p104 = por %p102, %p103
      %p105 = scmp.ne.s32.totalorder %s97, %s99
      %p106 = scmp.eq.s32.totalorder %s26, 1
      %p107 = por %p105, %p106
      %p108 = scmp.ne.s32.totalorder %s99, %s100
      %p109 = scmp.eq.s32.totalorder %s26, 0
      %p110 = por %p108, %p109
      %p111 = scmp.ne.s32.totalorder %s99, %s100
      %p112 = scmp.eq.s32.totalorder %s27, 1
      %p113 = por %p111, %p112
      %p115 = scmp.ne.s32.totalorder %s100, %s114
      %p116 = scmp.eq.s32.totalorder %s27, 0
      %p117 = por %p115, %p116
      %s119 = sadd.s32 %s118, 1
      %p122 = scmp.eq.s32.totalorder %s21, 1
      %p123 = scmp.ne.s32.totalorder %s118, %s120
      %p124 = scmp.eq.s32.totalorder %s21, 0
      %p125 = por %p123, %p124
      %p126 = scmp.ne.s32.totalorder %s118, %s120
      %p127 = scmp.eq.s32.totalorder %s26, 1
      %p128 = por %p126, %p127
      %p129 = scmp.ne.s32.totalorder %s120, %s121
      %p130 = scmp.eq.s32.totalorder %s26, 0
      %p131 = por %p129, %p130
      %p132 = scmp.ne.s32.totalorder %s120, %s121
      %p133 = scmp.eq.s32.totalorder %s27, 1
      %p134 = por %p132, %p133
      %p136 = scmp.ne.s32.totalorder %s121, %s135
      %p137 = scmp.eq.s32.totalorder %s27, 0
      %p138 = por %p136, %p137
      %s140 = sadd.s32 %s139, 1
      %p143 = scmp.eq.s32.totalorder %s21, 1
      %p144 = scmp.ne.s32.totalorder %s139, %s141
      %p145 = scmp.eq.s32.totalorder %s21, 0
      %p146 = por %p144, %p145
      %p147 = scmp.ne.s32.totalorder %s139, %s141
      %p148 = scmp.eq.s32.totalorder %s26, 1
      %p149 = por %p147, %p148
      %p150 = scmp.ne.s32.totalorder %s141, %s142
      %p151 = scmp.eq.s32.totalorder %s26, 0
      %p152 = por %p150, %p151
      %p153 = scmp.ne.s32.totalorder %s141, %s142
      %p154 = scmp.eq.s32.totalorder %s27, 1
      %p155 = por %p153, %p154
      %p157 = scmp.ne.s32.totalorder %s142, %s156
      %p158 = scmp.eq.s32.totalorder %s27, 0
      %p159 = por %p157, %p158
      %s161 = sadd.s32 %s160, 1
      %p164 = scmp.eq.s32.totalorder %s21, 1
      %p165 = scmp.ne.s32.totalorder %s160, %s162
      %p166 = scmp.eq.s32.totalorder %s21, 0
      %p167 = por %p165, %p166
      %p168 = scmp.ne.s32.totalorder %s160, %s162
      %p169 = scmp.eq.s32.totalorder %s26, 1
      %p170 = por %p168, %p169
      %p171 = scmp.ne.s32.totalorder %s162, %s163
      %p172 = scmp.eq.s32.totalorder %s26, 0
      %p173 = por %p171, %p172
      %p174 = scmp.ne.s32.totalorder %s162, %s163
      %p175 = scmp.eq.s32.totalorder %s27, 1
      %p176 = por %p174, %p175
      %p178 = scmp.ne.s32.totalorder %s163, %s177
      %p179 = scmp.eq.s32.totalorder %s27, 0
      %p180 = por %p178, %p179
      %s182 = sadd.s32 %s181, 1
      %p185 = scmp.eq.s32.totalorder %s21, 1
      %p186 = scmp.ne.s32.totalorder %s181, %s183
      %p187 = scmp.eq.s32.totalorder %s21, 0
      %p188 = por %p186, %p187
      %p189 = scmp.ne.s32.totalorder %s181, %s183
      %p190 = scmp.eq.s32.totalorder %s26, 1
      %p191 = por %p189, %p190
      %p192 = scmp.ne.s32.totalorder %s183, %s184
      %p193 = scmp.eq.s32.totalorder %s26, 0
      %p194 = por %p192, %p193
      %p195 = scmp.ne.s32.totalorder %s183, %s184
      %p196 = scmp.eq.s32.totalorder %s27, 1
      %p197 = por %p195, %p196
      %p199 = scmp.ne.s32.totalorder %s184, %s198
      %p200 = scmp.eq.s32.totalorder %s27, 0
      %p201 = por %p199, %p200
      %s203 = sadd.s32 %s202, 1
      %p206 = scmp.eq.s32.totalorder %s21, 1
      %p207 = scmp.ne.s32.totalorder %s202, %s204
      %p208 = scmp.eq.s32.totalorder %s21, 0
      %p209 = por %p207, %p208
      %p210 = scmp.ne.s32.totalorder %s202, %s204
      %p211 = scmp.eq.s32.totalorder %s26, 1
      %p212 = por %p210, %p211
      %p213 = scmp.ne.s32.totalorder %s204, %s205
      %p214 = scmp.eq.s32.totalorder %s26, 0
      %p215 = por %p213, %p214
      %p216 = scmp.ne.s32.totalorder %s204, %s205
      %p217 = scmp.eq.s32.totalorder %s27, 1
      %p218 = por %p216, %p217
      %p220 = scmp.ne.s32.totalorder %s205, %s219
      %p221 = scmp.eq.s32.totalorder %s27, 0
      %p222 = por %p220, %p221
      %s224 = sadd.s32 %s223, 1
      %p227 = scmp.eq.s32.totalorder %s21, 1
      %p228 = scmp.ne.s32.totalorder %s223, %s225
      %p229 = scmp.eq.s32.totalorder %s21, 0
      %p230 = por %p228, %p229
      %p231 = scmp.ne.s32.totalorder %s223, %s225
      %p232 = scmp.eq.s32.totalorder %s26, 1
      %p233 = por %p231, %p232
      %p234 = scmp.ne.s32.totalorder %s225, %s226
      %p235 = scmp.eq.s32.totalorder %s26, 0
      %p236 = por %p234, %p235
      %p237 = scmp.ne.s32.totalorder %s225, %s226
      %p238 = scmp.eq.s32.totalorder %s27, 1
      %p239 = por %p237, %p238
      %p241 = scmp.ne.s32.totalorder %s226, %s240
      %p242 = scmp.eq.s32.totalorder %s27, 0
      %p243 = por %p241, %p242
      %s244 = ssub.s32 %s21, %s28
      %p245 = scmp.eq.s32.totalorder %s244, 0
      %s247 = sadd.s32 %s246, 1
      %s248 = scalar_select %p245, %s246, %s247
      %p251 = pneg %p245
      %p252 = scmp.eq.s32.totalorder %s21, 1
      %p253 = por %p251, %p252
      %p254 = scmp.ne.s32.totalorder %s246, %s249
      %p255 = scmp.eq.s32.totalorder %s21, 0
      %p256 = por %p254, %p255
      %p257 = scmp.ne.s32.totalorder %s246, %s249
      %p258 = scmp.eq.s32.totalorder %s26, 1
      %p259 = por %p257, %p258
      %p260 = scmp.ne.s32.totalorder %s249, %s250
      %p261 = scmp.eq.s32.totalorder %s26, 0
      %p262 = por %p260, %p261
      %p263 = scmp.ne.s32.totalorder %s249, %s250
      %p264 = scmp.eq.s32.totalorder %s27, 1
      %p265 = por %p263, %p264
      %p267 = scmp.ne.s32.totalorder %s250, %s266
      %p268 = scmp.eq.s32.totalorder %s27, 0
      %p269 = por %p267, %p268
      %p270 = scmp.le.s32.totalorder 1, %s21
      %p271 = scmp.lt.s32.totalorder %s21, 3
      %p272 = pnand %p270, %p271
      %p273 = pneg %p272
      // Predicated region
      $region9: #{tpu_custom_call.1} parent=5 // pred_check
        _
      $region10: #{tpu_custom_call.1} parent=5 // pred_check_branch
        %275 = sbr.rel (%p272) target = $region12
      $region11: #{tpu_custom_call.1} parent=5 // pred_region
        %s276 = ssub.s32 %s21, 1
        // Predicated region
        $region13: #{tpu_custom_call.1} parent=11 // pred_check
          %p277 = pneg %p68
        $region14: #{tpu_custom_call.1} parent=11 // pred_check_branch
          %279 = sbr.rel (%p277) target = $region16
        $region15: #{tpu_custom_call.1} parent=11 // pred_region
          _
        $region16: #{tpu_custom_call.1} parent=11 // pred_fallthru
          _
        // Predicated region
        $region17: #{tpu_custom_call.1} parent=11 // pred_check
          %p280 = pneg %p89
        $region18: #{tpu_custom_call.1} parent=11 // pred_check_branch
          %282 = sbr.rel (%p280) target = $region20
        $region19: #{tpu_custom_call.1} parent=11 // pred_region
          _
        $region20: #{tpu_custom_call.1} parent=11 // pred_fallthru
          _
        // Predicated region
        $region21: #{tpu_custom_call.1} parent=11 // pred_check
          %p283 = pneg %p110
        $region22: #{tpu_custom_call.1} parent=11 // pred_check_branch
          %285 = sbr.rel (%p283) target = $region24
        $region23: #{tpu_custom_call.1} parent=11 // pred_region
          _
        $region24: #{tpu_custom_call.1} parent=11 // pred_fallthru
          _
        // Predicated region
        $region25: #{tpu_custom_call.1} parent=11 // pred_check
          %p286 = pneg %p131
        $region26: #{tpu_custom_call.1} parent=11 // pred_check_branch
          %288 = sbr.rel (%p286) target = $region28
        $region27: #{tpu_custom_call.1} parent=11 // pred_region
          _
        $region28: #{tpu_custom_call.1} parent=11 // pred_fallthru
          _
        // Predicated region
        $region29: #{tpu_custom_call.1} parent=11 // pred_check
          %p289 = pneg %p152
        $region30: #{tpu_custom_call.1} parent=11 // pred_check_branch
          %291 = sbr.rel (%p289) target = $region32
        $region31: #{tpu_custom_call.1} parent=11 // pred_region
          _
        $region32: #{tpu_custom_call.1} parent=11 // pred_fallthru
          _
        // Predicated region
        $region33: #{tpu_custom_call.1} parent=11 // pred_check
          %p292 = pneg %p173
        $region34: #{tpu_custom_call.1} parent=11 // pred_check_branch
          %294 = sbr.rel (%p292) target = $region36
        $region35: #{tpu_custom_call.1} parent=11 // pred_region
          _
        $region36: #{tpu_custom_call.1} parent=11 // pred_fallthru
          _
        // Predicated region
        $region37: #{tpu_custom_call.1} parent=11 // pred_check
          %p295 = pneg %p194
        $region38: #{tpu_custom_call.1} parent=11 // pred_check_branch
          %297 = sbr.rel (%p295) target = $region40
        $region39: #{tpu_custom_call.1} parent=11 // pred_region
          _
        $region40: #{tpu_custom_call.1} parent=11 // pred_fallthru
          _
        // Predicated region
        $region41: #{tpu_custom_call.1} parent=11 // pred_check
          %p298 = pneg %p215
        $region42: #{tpu_custom_call.1} parent=11 // pred_check_branch
          %300 = sbr.rel (%p298) target = $region44
        $region43: #{tpu_custom_call.1} parent=11 // pred_region
          _
        $region44: #{tpu_custom_call.1} parent=11 // pred_fallthru
          _
        // Predicated region
        $region45: #{tpu_custom_call.1} parent=11 // pred_check
          %p301 = pneg %p236
        $region46: #{tpu_custom_call.1} parent=11 // pred_check_branch
          %303 = sbr.rel (%p301) target = $region48
        $region47: #{tpu_custom_call.1} parent=11 // pred_region
          _
        $region48: #{tpu_custom_call.1} parent=11 // pred_fallthru
          _
      $region12: #{tpu_custom_call.1} parent=5 // pred_fallthru
        _
      %p304 = scmp.lt.s32.totalorder %s21, 2
      // Predicated region
      $region49: #{tpu_custom_call.1} parent=5 // pred_check
        %p305 = pneg %p304
      $region50: #{tpu_custom_call.1} parent=5 // pred_check_branch
        %307 = sbr.rel (%p305) target = $region52
      $region51: #{tpu_custom_call.1} parent=5 // pred_region
        // Predicated region
        $region53: #{tpu_custom_call.1} parent=51 // pred_check
          %p308 = pneg %p41
        $region54: #{tpu_custom_call.1} parent=51 // pred_check_branch
          %310 = sbr.rel (%p308) target = $region56
        $region55: #{tpu_custom_call.1} parent=51 // pred_region
          %s311 = smul.u32 128, %s21
          %p312 = scmp.lt.s32.totalorder %s311, 255
          %s313 = scalar_select %p312, %s311, 255
          %s314 = smul.addr %s313, 8
          %s315 = scalar_lea.vmem %s0, %s314
          %s316 = smul.u32 128, %s21
        $region56: #{tpu_custom_call.1} parent=51 // pred_fallthru
          _
      $region52: #{tpu_custom_call.1} parent=5 // pred_fallthru
        _
      %p317 = scmp.le.s32.totalorder 1, %s21
      %p318 = scmp.lt.s32.totalorder %s21, 3
      %p319 = pnand %p317, %p318
      %p320 = pneg %p319
      // Predicated region
      $region57: #{tpu_custom_call.1} parent=5 // pred_check
        _
      $region58: #{tpu_custom_call.1} parent=5 // pred_check_branch
        %322 = sbr.rel (%p319) target = $region60
      $region59: #{tpu_custom_call.1} parent=5 // pred_region
        %s323 = ssub.s32 %s21, 1
        %s324 = smul.u32 128, %s26
        %p325 = scmp.lt.s32.totalorder %s324, 255
        %s326 = scalar_select %p325, %s324, 255
        %s327 = smul.addr %s326, 8
        %s328 = scalar_lea.vmem %s0, %s327
        %p329 = pneg %p47
        %p330 = pneg %p44
        %p331 = pneg %p68
        %p332 = pneg %p65
        %p333 = pneg %p89
        %p334 = pneg %p86
        %p335 = pneg %p110
        %p336 = pneg %p107
        %p337 = pneg %p131
        %p338 = pneg %p128
        %p339 = pneg %p152
        %p340 = pneg %p149
        %p341 = pneg %p173
        %p342 = pneg %p170
        %p343 = pneg %p194
        %p344 = pneg %p191
        %p345 = pneg %p215
        %p346 = pneg %p212
        %p347 = pneg %p236
        %p348 = pneg %p233
        %p349 = pneg %p262
        %p350 = pneg %p259
        %s351 = sand.u32 %s249, 1
        %s352 = scalar_lea.sflag [#allocation4], %s351
        %s353 = sand.u32 %s249, 1
        %s354 = smul.addr %s353, 8
        %s355 = scalar_lea.vmem [#allocation3], %s354
        %s356 = smul.u32 128, %s26
        %p357 = scmp.lt.s32.totalorder %s356, 255
        %s358 = scalar_select %p357, %s356, 255
        %s359 = smul.addr %s358, 8
        %s360 = scalar_lea.vmem %s0, %s359
        %s361 = smul.u32 128, %s26
        %s362 = smul.u32 8, %s26
        %v364 = vld [vmem:[%s1] sm:$0xf]
        %v365 = vld [vmem:[%s1 + $0x4] sm:$0xf]
        %v366 = vld [vmem:[%s1 + $0x8] sm:$0xf]
        %v367 = vld [vmem:[%s1 + $0xc] sm:$0xf]
        %v368 = vld [vmem:[%s3] sm:$0xf]
        %v369 = vld [vmem:[%s3 + $0x4] sm:$0xf]
        %v370 = vld [vmem:[%s3 + $0x8] sm:$0xf]
        %v371 = vld [vmem:[%s3 + $0xc] sm:$0xf]
        %v372 = vld [vmem:[%s5] sm:$0xf]
        %v373 = vld [vmem:[%s5 + $0x4] sm:$0xf]
        %v374 = vld [vmem:[%s5 + $0x8] sm:$0xf]
        %v375 = vld [vmem:[%s5 + $0xc] sm:$0xf]
        %v376 = vld [vmem:[%s6] sm:$0xf]
        %v377 = vld [vmem:[%s6 + $0x4] sm:$0xf]
        %v378 = vld [vmem:[%s6 + $0x8] sm:$0xf]
        %v379 = vld [vmem:[%s6 + $0xc] sm:$0xf]
        %v380 = vld [vmem:[%s2] sm:$0xff]
        %v381 = vld [vmem:[%s2 + $0x8] sm:$0xff]
        %v382 = vld [vmem:[%s2 + $0x10] sm:$0xff]
        %v383 = vld [vmem:[%s2 + $0x18] sm:$0xff]
        %v384 = vld [vmem:[%s4] sm:$0xff]
        %v385 = vld [vmem:[%s4 + $0x8] sm:$0xff]
        %v386 = vld [vmem:[%s4 + $0x10] sm:$0xff]
        %v387 = vld [vmem:[%s4 + $0x18] sm:$0xff]
        %v388 = vld [vmem:[%s7] sm:$0xff]
        %v389 = vld [vmem:[%s7 + $0x8] sm:$0xff]
        %v390 = vld [vmem:[%s7 + $0x10] sm:$0xff]
        %v391 = vld [vmem:[%s7 + $0x18] sm:$0xff]
        %v392 = vld [vmem:[#allocation2] sm:$0x1]
        %v393 = vld [vmem:[%s8] sm:$0xff]
        %v394 = vld [vmem:[%s8 + $0x8] sm:$0xff]
        %v395 = vld [vmem:[%s8 + $0x10] sm:$0xff]
        %v396 = vld [vmem:[%s8 + $0x18] sm:$0xff]
        %v397 = vld [vmem:[%s360] sm:$0xff]
        %v398 = vld [vmem:[%s360 + $0x8] sm:$0xff]
        %v399 = vld [vmem:[%s360 + $0x10] sm:$0xff]
        %v400 = vld [vmem:[%s360 + $0x18] sm:$0xff]
        %v401 = vld [vmem:[%s360 + $0x20] sm:$0xff]
        %v402 = vld [vmem:[%s360 + $0x28] sm:$0xff]
        %v403 = vld [vmem:[%s360 + $0x30] sm:$0xff]
        %v404 = vld [vmem:[%s360 + $0x38] sm:$0xff]
        %v405 = vld [vmem:[%s360 + $0x40] sm:$0xff]
        %v406 = vld [vmem:[%s360 + $0x48] sm:$0xff]
        %v407 = vld [vmem:[%s360 + $0x50] sm:$0xff]
        %v408 = vld [vmem:[%s360 + $0x58] sm:$0xff]
        %v409 = vld [vmem:[%s360 + $0x60] sm:$0xff]
        %v410 = vld [vmem:[%s360 + $0x68] sm:$0xff]
        %v411 = vld [vmem:[%s360 + $0x70] sm:$0xff]
        %v412 = vld [vmem:[%s360 + $0x78] sm:$0xff]
        %v413 = vld [vmem:[%s360 + $0x80] sm:$0xff]
        %v414 = vld [vmem:[%s360 + $0x88] sm:$0xff]
        %v415 = vld [vmem:[%s360 + $0x90] sm:$0xff]
        %v416 = vld [vmem:[%s360 + $0x98] sm:$0xff]
        %v417 = vld [vmem:[%s360 + $0xa0] sm:$0xff]
        %v418 = vld [vmem:[%s360 + $0xa8] sm:$0xff]
        %v419 = vld [vmem:[%s360 + $0xb0] sm:$0xff]
        %v420 = vld [vmem:[%s360 + $0xb8] sm:$0xff]
        %v421 = vld [vmem:[%s360 + $0xc0] sm:$0xff]
        %v422 = vld [vmem:[%s360 + $0xc8] sm:$0xff]
        %v423 = vld [vmem:[%s360 + $0xd0] sm:$0xff]
        %v424 = vld [vmem:[%s360 + $0xd8] sm:$0xff]
        %v425 = vld [vmem:[%s360 + $0xe0] sm:$0xff]
        %v426 = vld [vmem:[%s360 + $0xe8] sm:$0xff]
        %v427 = vld [vmem:[%s360 + $0xf0] sm:$0xff]
        %v428 = vld [vmem:[%s360 + $0xf8] sm:$0xff]
        %v429 = vld [vmem:[%s360 + $0x100] sm:$0xff]
        %v430 = vld [vmem:[%s360 + $0x108] sm:$0xff]
        %v431 = vld [vmem:[%s360 + $0x110] sm:$0xff]
        %v432 = vld [vmem:[%s360 + $0x118] sm:$0xff]
        %v433 = vld [vmem:[%s360 + $0x120] sm:$0xff]
        %v434 = vld [vmem:[%s360 + $0x128] sm:$0xff]
        %v435 = vld [vmem:[%s360 + $0x130] sm:$0xff]
        %v436 = vld [vmem:[%s360 + $0x138] sm:$0xff]
        %v437 = vld [vmem:[%s360 + $0x140] sm:$0xff]
        %v438 = vld [vmem:[%s360 + $0x148] sm:$0xff]
        %v439 = vld [vmem:[%s360 + $0x150] sm:$0xff]
        %v440 = vld [vmem:[%s360 + $0x158] sm:$0xff]
        %v441 = vld [vmem:[%s360 + $0x160] sm:$0xff]
        %v442 = vld [vmem:[%s360 + $0x168] sm:$0xff]
        %v443 = vld [vmem:[%s360 + $0x170] sm:$0xff]
        %v444 = vld [vmem:[%s360 + $0x178] sm:$0xff]
        %v445 = vld [vmem:[%s360 + $0x180] sm:$0xff]
        %v446 = vld [vmem:[%s360 + $0x188] sm:$0xff]
        %v447 = vld [vmem:[%s360 + $0x190] sm:$0xff]
        %v448 = vld [vmem:[%s360 + $0x198] sm:$0xff]
        %v449 = vld [vmem:[%s360 + $0x1a0] sm:$0xff]
        %v450 = vld [vmem:[%s360 + $0x1a8] sm:$0xff]
        %v451 = vld [vmem:[%s360 + $0x1b0] sm:$0xff]
        %v452 = vld [vmem:[%s360 + $0x1b8] sm:$0xff]
        %v453 = vld [vmem:[%s360 + $0x1c0] sm:$0xff]
        %v454 = vld [vmem:[%s360 + $0x1c8] sm:$0xff]
        %v455 = vld [vmem:[%s360 + $0x1d0] sm:$0xff]
        %v456 = vld [vmem:[%s360 + $0x1d8] sm:$0xff]
        %v457 = vld [vmem:[%s360 + $0x1e0] sm:$0xff]
        %v458 = vld [vmem:[%s360 + $0x1e8] sm:$0xff]
        %v459 = vld [vmem:[%s360 + $0x1f0] sm:$0xff]
        %v460 = vld [vmem:[%s360 + $0x1f8] sm:$0xff]
        %v461 = vpack.c.bf16 %v398, %v397
        %v462 = vpack.c.bf16 %v400, %v399
        %v463 = vpack.c.bf16 %v402, %v401
        %v464 = vpack.c.bf16 %v404, %v403
        %v465 = vpack.c.bf16 %v406, %v405
        %v466 = vpack.c.bf16 %v408, %v407
        %v467 = vpack.c.bf16 %v410, %v409
        %v468 = vpack.c.bf16 %v412, %v411
        %v469 = vpack.c.bf16 %v414, %v413
        %v470 = vpack.c.bf16 %v416, %v415
        %v471 = vpack.c.bf16 %v418, %v417
        %v472 = vpack.c.bf16 %v420, %v419
        %v473 = vpack.c.bf16 %v422, %v421
        %v474 = vpack.c.bf16 %v424, %v423
        %v475 = vpack.c.bf16 %v426, %v425
        %v476 = vpack.c.bf16 %v428, %v427
        %v477 = vpack.c.bf16 %v430, %v429
        %v478 = vpack.c.bf16 %v432, %v431
        %v479 = vpack.c.bf16 %v434, %v433
        %v480 = vpack.c.bf16 %v436, %v435
        %v481 = vpack.c.bf16 %v438, %v437
        %v482 = vpack.c.bf16 %v440, %v439
        %v483 = vpack.c.bf16 %v442, %v441
        %v484 = vpack.c.bf16 %v444, %v443
        %v485 = vpack.c.bf16 %v446, %v445
        %v486 = vpack.c.bf16 %v448, %v447
        %v487 = vpack.c.bf16 %v450, %v449
        %v488 = vpack.c.bf16 %v452, %v451
        %v489 = vpack.c.bf16 %v454, %v453
        %v490 = vpack.c.bf16 %v456, %v455
        %v491 = vpack.c.bf16 %v458, %v457
        %v492 = vpack.c.bf16 %v460, %v459
        %494 = vset.pattern.permute.xlu0 0
        %495 = vperm.xlu0 %494, %v380
        %v496 = vpop.permute.xlu0 %495
        %499 = vset.pattern.permute.xlu0 0
        %500 = vperm.xlu0 %499, %v381
        %v501 = vpop.permute.xlu0 %500
        %504 = vset.pattern.permute.xlu0 0
        %505 = vperm.xlu0 %504, %v382
        %v506 = vpop.permute.xlu0 %505
        %509 = vset.pattern.permute.xlu0 0
        %510 = vperm.xlu0 %509, %v383
        %v511 = vpop.permute.xlu0 %510
        %v517 = vunpack.c.l.b16 %v364
        %v518 = vunpack.c.l.b16 %v365
        %v519 = vunpack.c.l.b16 %v366
        %v520 = vunpack.c.l.b16 %v367
        %v521 = vpack.c.b16 %v518, %v517
        %v522 = vpack.c.b16 %v520, %v519
        %vm523 = vcmask 64512
        %v525 = vsel %vm523, %v521, 0
        %v528 = vsel %vm523, %v522, 0
        %v531 = vsel %vm523, %v461, 0
        %v534 = vsel %vm523, %v462, 0
        %v537 = vsel %vm523, %v463, 0
        %v540 = vsel %vm523, %v464, 0
        %v543 = vsel %vm523, %v465, 0
        %v546 = vsel %vm523, %v466, 0
        %v549 = vsel %vm523, %v467, 0
        %v552 = vsel %vm523, %v468, 0
        %v555 = vsel %vm523, %v469, 0
        %v558 = vsel %vm523, %v470, 0
        %v561 = vsel %vm523, %v471, 0
        %v564 = vsel %vm523, %v472, 0
        %v567 = vsel %vm523, %v473, 0
        %v570 = vsel %vm523, %v474, 0
        %v573 = vsel %vm523, %v475, 0
        %v576 = vsel %vm523, %v476, 0
        %v579 = vsel %vm523, %v477, 0
        %v582 = vsel %vm523, %v478, 0
        %v585 = vsel %vm523, %v479, 0
        %v588 = vsel %vm523, %v480, 0
        %v591 = vsel %vm523, %v481, 0
        %v594 = vsel %vm523, %v482, 0
        %v597 = vsel %vm523, %v483, 0
        %v600 = vsel %vm523, %v484, 0
        %v603 = vsel %vm523, %v485, 0
        %v606 = vsel %vm523, %v486, 0
        %v609 = vsel %vm523, %v487, 0
        %v612 = vsel %vm523, %v488, 0
        %v615 = vsel %vm523, %v489, 0
        %v618 = vsel %vm523, %v490, 0
        %v621 = vsel %vm523, %v491, 0
        %v624 = vsel %vm523, %v492, 0
        %626 = vmatpush.bf16.xpose.msra.mxu0 %v552
        %627 = vmatpush.bf16.xpose.msra.mxu0 %v549
        %628 = vmatpush.bf16.xpose.msra.mxu0 %v546
        %629 = vmatpush.bf16.xpose.msra.mxu0 %v543
        %630 = vmatpush.bf16.xpose.msra.mxu0 %v540
        %631 = vmatpush.bf16.xpose.msra.mxu0 %v537
        %632 = vmatpush.bf16.xpose.msra.mxu0 %v534
        %633 = vmatpush.bf16.xpose.msra.mxu0 %v531
        %634 = vmatmul.bf16.gmra.mxu0 %v525
        %v635 = vpop.f32.mrf.mxu0
        %v636 = vadd.f32 %v496, %v635
        %v637 = vpop.f32.mrf.mxu0
        %v638 = vadd.f32 %v501, %v637
        %639 = vmatmul.bf16.gmra.mxu0 %v528
        %v640 = vpop.f32.mrf.mxu0
        %v641 = vadd.f32 %v506, %v640
        %v642 = vpop.f32.mrf.mxu0
        %v643 = vadd.f32 %v511, %v642
        %644 = vdwg.mxu0
        %645 = vmatpush.bf16.xpose.msra.mxu0 %v576
        %646 = vmatpush.bf16.xpose.msra.mxu0 %v573
        %647 = vmatpush.bf16.xpose.msra.mxu0 %v570
        %648 = vmatpush.bf16.xpose.msra.mxu0 %v567
        %649 = vmatpush.bf16.xpose.msra.mxu0 %v564
        %650 = vmatpush.bf16.xpose.msra.mxu0 %v561
        %651 = vmatpush.bf16.xpose.msra.mxu0 %v558
        %652 = vmatpush.bf16.xpose.msra.mxu0 %v555
        %653 = vmatmul.bf16.gmra.mxu0 %v525
        %v654 = vpop.f32.mrf.mxu0
        %v655 = vadd.f32 %v496, %v654
        %v656 = vpop.f32.mrf.mxu0
        %v657 = vadd.f32 %v501, %v656
        %658 = vmatmul.bf16.gmra.mxu0 %v528
        %v659 = vpop.f32.mrf.mxu0
        %v660 = vadd.f32 %v506, %v659
        %v661 = vpop.f32.mrf.mxu0
        %v662 = vadd.f32 %v511, %v661
        %663 = vdwg.mxu0
        %664 = vmatpush.bf16.xpose.msra.mxu0 %v600
        %665 = vmatpush.bf16.xpose.msra.mxu0 %v597
        %666 = vmatpush.bf16.xpose.msra.mxu0 %v594
        %667 = vmatpush.bf16.xpose.msra.mxu0 %v591
        %668 = vmatpush.bf16.xpose.msra.mxu0 %v588
        %669 = vmatpush.bf16.xpose.msra.mxu0 %v585
        %670 = vmatpush.bf16.xpose.msra.mxu0 %v582
        %671 = vmatpush.bf16.xpose.msra.mxu0 %v579
        %672 = vmatmul.bf16.gmra.mxu0 %v525
        %v673 = vpop.f32.mrf.mxu0
        %v674 = vadd.f32 %v496, %v673
        %v675 = vpop.f32.mrf.mxu0
        %v676 = vadd.f32 %v501, %v675
        %677 = vmatmul.bf16.gmra.mxu0 %v528
        %v678 = vpop.f32.mrf.mxu0
        %v679 = vadd.f32 %v506, %v678
        %v680 = vpop.f32.mrf.mxu0
        %v681 = vadd.f32 %v511, %v680
        %682 = vdwg.mxu0
        %683 = vmatpush.bf16.xpose.msra.mxu0 %v624
        %684 = vmatpush.bf16.xpose.msra.mxu0 %v621
        %685 = vmatpush.bf16.xpose.msra.mxu0 %v618
        %686 = vmatpush.bf16.xpose.msra.mxu0 %v615
        %687 = vmatpush.bf16.xpose.msra.mxu0 %v612
        %688 = vmatpush.bf16.xpose.msra.mxu0 %v609
        %689 = vmatpush.bf16.xpose.msra.mxu0 %v606
        %690 = vmatpush.bf16.xpose.msra.mxu0 %v603
        %691 = vmatmul.bf16.gmra.mxu0 %v525
        %v692 = vpop.f32.mrf.mxu0
        %v693 = vadd.f32 %v496, %v692
        %v694 = vpop.f32.mrf.mxu0
        %v695 = vadd.f32 %v501, %v694
        %696 = vmatmul.bf16.gmra.mxu0 %v528
        %v697 = vpop.f32.mrf.mxu0
        %v698 = vadd.f32 %v506, %v697
        %v699 = vpop.f32.mrf.mxu0
        %v700 = vadd.f32 %v511, %v699
        %701 = vdwg.mxu0
        %vm702 = vcmp.gt.f32.partialorder %v636, 0.0
        %vm703 = vcmp.gt.f32.partialorder %v655, 0.0
        %vm704 = vcmp.gt.f32.partialorder %v674, 0.0
        %vm705 = vcmp.gt.f32.partialorder %v693, 0.0
        %vm706 = vcmp.gt.f32.partialorder %v638, 0.0
        %vm707 = vcmp.gt.f32.partialorder %v657, 0.0
        %vm708 = vcmp.gt.f32.partialorder %v676, 0.0
        %vm709 = vcmp.gt.f32.partialorder %v695, 0.0
        %vm710 = vcmp.gt.f32.partialorder %v641, 0.0
        %vm711 = vcmp.gt.f32.partialorder %v660, 0.0
        %vm712 = vcmp.gt.f32.partialorder %v679, 0.0
        %vm713 = vcmp.gt.f32.partialorder %v698, 0.0
        %vm714 = vcmp.gt.f32.partialorder %v643, 0.0
        %vm715 = vcmp.gt.f32.partialorder %v662, 0.0
        %vm716 = vcmp.gt.f32.partialorder %v681, 0.0
        %vm717 = vcmp.gt.f32.partialorder %v700, 0.0
        %v718 = vmul.f32 %v636, 0.01
        %v719 = vmul.f32 %v655, 0.01
        %v720 = vmul.f32 %v674, 0.01
        %v721 = vmul.f32 %v693, 0.01
        %v722 = vmul.f32 %v638, 0.01
        %v723 = vmul.f32 %v657, 0.01
        %v724 = vmul.f32 %v676, 0.01
        %v725 = vmul.f32 %v695, 0.01
        %v726 = vmul.f32 %v641, 0.01
        %v727 = vmul.f32 %v660, 0.01
        %v728 = vmul.f32 %v679, 0.01
        %v729 = vmul.f32 %v698, 0.01
        %v730 = vmul.f32 %v643, 0.01
        %v731 = vmul.f32 %v662, 0.01
        %v732 = vmul.f32 %v681, 0.01
        %v733 = vmul.f32 %v700, 0.01
        %v734 = vsel %vm702, %v636, %v718
        %v735 = vsel %vm703, %v655, %v719
        %v736 = vsel %vm704, %v674, %v720
        %v737 = vsel %vm705, %v693, %v721
        %v738 = vsel %vm706, %v638, %v722
        %v739 = vsel %vm707, %v657, %v723
        %v740 = vsel %vm708, %v676, %v724
        %v741 = vsel %vm709, %v695, %v725
        %v742 = vsel %vm710, %v641, %v726
        %v743 = vsel %vm711, %v660, %v727
        %v744 = vsel %vm712, %v679, %v728
        %v745 = vsel %vm713, %v698, %v729
        %v746 = vsel %vm714, %v643, %v730
        %v747 = vsel %vm715, %v662, %v731
        %v748 = vsel %vm716, %v681, %v732
        %v749 = vsel %vm717, %v700, %v733
        %v750 = vpack.c.bf16 %v738, %v734
        %v751 = vpack.c.bf16 %v739, %v735
        %v752 = vpack.c.bf16 %v740, %v736
        %v753 = vpack.c.bf16 %v741, %v737
        %v754 = vpack.c.bf16 %v746, %v742
        %v755 = vpack.c.bf16 %v747, %v743
        %v756 = vpack.c.bf16 %v748, %v744
        %v757 = vpack.c.bf16 %v749, %v745
        %759 = vset.pattern.permute.xlu0 0
        %760 = vperm.xlu0 %759, %v384
        %v761 = vpop.permute.xlu0 %760
        %764 = vset.pattern.permute.xlu0 0
        %765 = vperm.xlu0 %764, %v385
        %v766 = vpop.permute.xlu0 %765
        %769 = vset.pattern.permute.xlu0 0
        %770 = vperm.xlu0 %769, %v386
        %v771 = vpop.permute.xlu0 %770
        %774 = vset.pattern.permute.xlu0 0
        %775 = vperm.xlu0 %774, %v387
        %v776 = vpop.permute.xlu0 %775
        %v782 = vunpack.c.l.b16 %v368
        %v783 = vunpack.c.l.b16 %v369
        %v784 = vunpack.c.l.b16 %v370
        %v785 = vunpack.c.l.b16 %v371
        %v786 = vpack.c.b16 %v783, %v782
        %v787 = vpack.c.b16 %v785, %v784
        %vm788 = vcmask 261120
        %v790 = vsel %vm788, %v786, 0
        %v793 = vsel %vm788, %v787, 0
        %795 = vmatpush.bf16.msra.mxu0 0
        %796 = vmatpush.bf16.msra.mxu0 0
        %797 = vmatpush.bf16.msra.mxu0 0
        %798 = vmatpush.bf16.msra.mxu0 0
        %799 = vmatpush.bf16.msra.mxu0 0
        %800 = vmatpush.bf16.msra.mxu0 0
        %801 = vmatpush.bf16.msra.mxu0 %v754
        %802 = vmatpush.bf16.msra.mxu0 %v750
        %803 = vmatmul.bf16.gmra.mxu0 %v790
        %v804 = vpop.f32.mrf.mxu0
        %v805 = vadd.f32 %v761, %v804
        %v806 = vpop.f32.mrf.mxu0
        %v807 = vadd.f32 %v766, %v806
        %808 = vmatmul.bf16.gmra.mxu0 %v793
        %v809 = vpop.f32.mrf.mxu0
        %v810 = vadd.f32 %v771, %v809
        %v811 = vpop.f32.mrf.mxu0
        %v812 = vadd.f32 %v776, %v811
        %813 = vdwg.mxu0
        %814 = vmatpush.bf16.msra.mxu0 0
        %815 = vmatpush.bf16.msra.mxu0 0
        %816 = vmatpush.bf16.msra.mxu0 0
        %817 = vmatpush.bf16.msra.mxu0 0
        %818 = vmatpush.bf16.msra.mxu0 0
        %819 = vmatpush.bf16.msra.mxu0 0
        %820 = vmatpush.bf16.msra.mxu0 %v755
        %821 = vmatpush.bf16.msra.mxu0 %v751
        %822 = vmatmul.bf16.gmra.mxu0 %v790
        %v823 = vpop.f32.mrf.mxu0
        %v824 = vadd.f32 %v761, %v823
        %v825 = vpop.f32.mrf.mxu0
        %v826 = vadd.f32 %v766, %v825
        %827 = vmatmul.bf16.gmra.mxu0 %v793
        %v828 = vpop.f32.mrf.mxu0
        %v829 = vadd.f32 %v771, %v828
        %v830 = vpop.f32.mrf.mxu0
        %v831 = vadd.f32 %v776, %v830
        %832 = vdwg.mxu0
        %833 = vmatpush.bf16.msra.mxu0 0
        %834 = vmatpush.bf16.msra.mxu0 0
        %835 = vmatpush.bf16.msra.mxu0 0
        %836 = vmatpush.bf16.msra.mxu0 0
        %837 = vmatpush.bf16.msra.mxu0 0
        %838 = vmatpush.bf16.msra.mxu0 0
        %839 = vmatpush.bf16.msra.mxu0 %v756
        %840 = vmatpush.bf16.msra.mxu0 %v752
        %841 = vmatmul.bf16.gmra.mxu0 %v790
        %v842 = vpop.f32.mrf.mxu0
        %v843 = vadd.f32 %v761, %v842
        %v844 = vpop.f32.mrf.mxu0
        %v845 = vadd.f32 %v766, %v844
        %846 = vmatmul.bf16.gmra.mxu0 %v793
        %v847 = vpop.f32.mrf.mxu0
        %v848 = vadd.f32 %v771, %v847
        %v849 = vpop.f32.mrf.mxu0
        %v850 = vadd.f32 %v776, %v849
        %851 = vdwg.mxu0
        %852 = vmatpush.bf16.msra.mxu0 0
        %853 = vmatpush.bf16.msra.mxu0 0
        %854 = vmatpush.bf16.msra.mxu0 0
        %855 = vmatpush.bf16.msra.mxu0 0
        %856 = vmatpush.bf16.msra.mxu0 0
        %857 = vmatpush.bf16.msra.mxu0 0
        %858 = vmatpush.bf16.msra.mxu0 %v757
        %859 = vmatpush.bf16.msra.mxu0 %v753
        %860 = vmatmul.bf16.gmra.mxu0 %v790
        %v861 = vpop.f32.mrf.mxu0
        %v862 = vadd.f32 %v761, %v861
        %v863 = vpop.f32.mrf.mxu0
        %v864 = vadd.f32 %v766, %v863
        %865 = vmatmul.bf16.gmra.mxu0 %v793
        %v866 = vpop.f32.mrf.mxu0
        %v867 = vadd.f32 %v771, %v866
        %v868 = vpop.f32.mrf.mxu0
        %v869 = vadd.f32 %v776, %v868
        %870 = vdwg.mxu0
        %vm871 = vcmp.gt.f32.partialorder %v805, 0.0
        %vm872 = vcmp.gt.f32.partialorder %v824, 0.0
        %vm873 = vcmp.gt.f32.partialorder %v843, 0.0
        %vm874 = vcmp.gt.f32.partialorder %v862, 0.0
        %vm875 = vcmp.gt.f32.partialorder %v807, 0.0
        %vm876 = vcmp.gt.f32.partialorder %v826, 0.0
        %vm877 = vcmp.gt.f32.partialorder %v845, 0.0
        %vm878 = vcmp.gt.f32.partialorder %v864, 0.0
        %vm879 = vcmp.gt.f32.partialorder %v810, 0.0
        %vm880 = vcmp.gt.f32.partialorder %v829, 0.0
        %vm881 = vcmp.gt.f32.partialorder %v848, 0.0
        %vm882 = vcmp.gt.f32.partialorder %v867, 0.0
        %vm883 = vcmp.gt.f32.partialorder %v812, 0.0
        %vm884 = vcmp.gt.f32.partialorder %v831, 0.0
        %vm885 = vcmp.gt.f32.partialorder %v850, 0.0
        %vm886 = vcmp.gt.f32.partialorder %v869, 0.0
        %v887 = vmul.f32 %v805, 0.01
        %v888 = vmul.f32 %v824, 0.01
        %v889 = vmul.f32 %v843, 0.01
        %v890 = vmul.f32 %v862, 0.01
        %v891 = vmul.f32 %v807, 0.01
        %v892 = vmul.f32 %v826, 0.01
        %v893 = vmul.f32 %v845, 0.01
        %v894 = vmul.f32 %v864, 0.01
        %v895 = vmul.f32 %v810, 0.01
        %v896 = vmul.f32 %v829, 0.01
        %v897 = vmul.f32 %v848, 0.01
        %v898 = vmul.f32 %v867, 0.01
        %v899 = vmul.f32 %v812, 0.01
        %v900 = vmul.f32 %v831, 0.01
        %v901 = vmul.f32 %v850, 0.01
        %v902 = vmul.f32 %v869, 0.01
        %v903 = vsel %vm871, %v805, %v887
        %v904 = vsel %vm872, %v824, %v888
        %v905 = vsel %vm873, %v843, %v889
        %v906 = vsel %vm874, %v862, %v890
        %v907 = vsel %vm875, %v807, %v891
        %v908 = vsel %vm876, %v826, %v892
        %v909 = vsel %vm877, %v845, %v893
        %v910 = vsel %vm878, %v864, %v894
        %v911 = vsel %vm879, %v810, %v895
        %v912 = vsel %vm880, %v829, %v896
        %v913 = vsel %vm881, %v848, %v897
        %v914 = vsel %vm882, %v867, %v898
        %v915 = vsel %vm883, %v812, %v899
        %v916 = vsel %vm884, %v831, %v900
        %v917 = vsel %vm885, %v850, %v901
        %v918 = vsel %vm886, %v869, %v902
        %v919 = vpack.c.bf16 %v907, %v903
        %v920 = vpack.c.bf16 %v908, %v904
        %v921 = vpack.c.bf16 %v909, %v905
        %v922 = vpack.c.bf16 %v910, %v906
        %v923 = vpack.c.bf16 %v915, %v911
        %v924 = vpack.c.bf16 %v916, %v912
        %v925 = vpack.c.bf16 %v917, %v913
        %v926 = vpack.c.bf16 %v918, %v914
        %v931 = vunpack.c.l.b16 %v376
        %v932 = vunpack.c.l.b16 %v377
        %v933 = vunpack.c.l.b16 %v378
        %v934 = vunpack.c.l.b16 %v379
        %v935 = vpack.c.b16 %v932, %v931
        %v936 = vpack.c.b16 %v934, %v933
        %v938 = vsel %vm523, %v935, 0
        %v941 = vsel %vm523, %v936, 0
        %943 = vmatpush.bf16.xpose.msra.mxu0 %v552
        %944 = vmatpush.bf16.xpose.msra.mxu0 %v549
        %945 = vmatpush.bf16.xpose.msra.mxu0 %v546
        %946 = vmatpush.bf16.xpose.msra.mxu0 %v543
        %947 = vmatpush.bf16.xpose.msra.mxu0 %v540
        %948 = vmatpush.bf16.xpose.msra.mxu0 %v537
        %949 = vmatpush.bf16.xpose.msra.mxu0 %v534
        %950 = vmatpush.bf16.xpose.msra.mxu0 %v531
        %951 = vmatmul.bf16.gmra.mxu0 %v938
        %v952 = vpop.f32.mrf.mxu0
        %v953 = vadd.f32 0.0, %v952
        %v954 = vpop.f32.mrf.mxu0
        %v955 = vadd.f32 0.0, %v954
        %956 = vmatmul.bf16.gmra.mxu0 %v941
        %v957 = vpop.f32.mrf.mxu0
        %v958 = vadd.f32 0.0, %v957
        %v959 = vpop.f32.mrf.mxu0
        %v960 = vadd.f32 0.0, %v959
        %961 = vdwg.mxu0
        %962 = vmatpush.bf16.xpose.msra.mxu0 %v576
        %963 = vmatpush.bf16.xpose.msra.mxu0 %v573
        %964 = vmatpush.bf16.xpose.msra.mxu0 %v570
        %965 = vmatpush.bf16.xpose.msra.mxu0 %v567
        %966 = vmatpush.bf16.xpose.msra.mxu0 %v564
        %967 = vmatpush.bf16.xpose.msra.mxu0 %v561
        %968 = vmatpush.bf16.xpose.msra.mxu0 %v558
        %969 = vmatpush.bf16.xpose.msra.mxu0 %v555
        %970 = vmatmul.bf16.gmra.mxu0 %v938
        %v971 = vpop.f32.mrf.mxu0
        %v972 = vadd.f32 0.0, %v971
        %v973 = vpop.f32.mrf.mxu0
        %v974 = vadd.f32 0.0, %v973
        %975 = vmatmul.bf16.gmra.mxu0 %v941
        %v976 = vpop.f32.mrf.mxu0
        %v977 = vadd.f32 0.0, %v976
        %v978 = vpop.f32.mrf.mxu0
        %v979 = vadd.f32 0.0, %v978
        %980 = vdwg.mxu0
        %981 = vmatpush.bf16.xpose.msra.mxu0 %v600
        %982 = vmatpush.bf16.xpose.msra.mxu0 %v597
        %983 = vmatpush.bf16.xpose.msra.mxu0 %v594
        %984 = vmatpush.bf16.xpose.msra.mxu0 %v591
        %985 = vmatpush.bf16.xpose.msra.mxu0 %v588
        %986 = vmatpush.bf16.xpose.msra.mxu0 %v585
        %987 = vmatpush.bf16.xpose.msra.mxu0 %v582
        %988 = vmatpush.bf16.xpose.msra.mxu0 %v579
        %989 = vmatmul.bf16.gmra.mxu0 %v938
        %v990 = vpop.f32.mrf.mxu0
        %v991 = vadd.f32 0.0, %v990
        %v992 = vpop.f32.mrf.mxu0
        %v993 = vadd.f32 0.0, %v992
        %994 = vmatmul.bf16.gmra.mxu0 %v941
        %v995 = vpop.f32.mrf.mxu0
        %v996 = vadd.f32 0.0, %v995
        %v997 = vpop.f32.mrf.mxu0
        %v998 = vadd.f32 0.0, %v997
        %999 = vdwg.mxu0
        %1000 = vmatpush.bf16.xpose.msra.mxu0 %v624
        %1001 = vmatpush.bf16.xpose.msra.mxu0 %v621
        %1002 = vmatpush.bf16.xpose.msra.mxu0 %v618
        %1003 = vmatpush.bf16.xpose.msra.mxu0 %v615
        %1004 = vmatpush.bf16.xpose.msra.mxu0 %v612
        %1005 = vmatpush.bf16.xpose.msra.mxu0 %v609
        %1006 = vmatpush.bf16.xpose.msra.mxu0 %v606
        %1007 = vmatpush.bf16.xpose.msra.mxu0 %v603
        %1008 = vmatmul.bf16.gmra.mxu0 %v938
        %v1009 = vpop.f32.mrf.mxu0
        %v1010 = vadd.f32 0.0, %v1009
        %v1011 = vpop.f32.mrf.mxu0
        %v1012 = vadd.f32 0.0, %v1011
        %1013 = vmatmul.bf16.gmra.mxu0 %v941
        %v1014 = vpop.f32.mrf.mxu0
        %v1015 = vadd.f32 0.0, %v1014
        %v1016 = vpop.f32.mrf.mxu0
        %v1017 = vadd.f32 0.0, %v1016
        %1018 = vdwg.mxu0
        %v1023 = vunpack.c.l.b16 %v372
        %v1024 = vunpack.c.l.b16 %v373
        %v1025 = vunpack.c.l.b16 %v374
        %v1026 = vunpack.c.l.b16 %v375
        %v1027 = vpack.c.b16 %v1024, %v1023
        %v1028 = vpack.c.b16 %v1026, %v1025
        %v1030 = vsel %vm788, %v1027, 0
        %v1033 = vsel %vm788, %v1028, 0
        %1035 = vmatpush.bf16.msra.mxu0 0
        %1036 = vmatpush.bf16.msra.mxu0 0
        %1037 = vmatpush.bf16.msra.mxu0 0
        %1038 = vmatpush.bf16.msra.mxu0 0
        %1039 = vmatpush.bf16.msra.mxu0 0
        %1040 = vmatpush.bf16.msra.mxu0 0
        %1041 = vmatpush.bf16.msra.mxu0 %v923
        %1042 = vmatpush.bf16.msra.mxu0 %v919
        %1043 = vmatmul.bf16.gmra.mxu0 %v1030
        %v1044 = vpop.f32.mrf.mxu0
        %v1045 = vadd.f32 %v953, %v1044
        %v1046 = vpop.f32.mrf.mxu0
        %v1047 = vadd.f32 %v955, %v1046
        %1048 = vmatmul.bf16.gmra.mxu0 %v1033
        %v1049 = vpop.f32.mrf.mxu0
        %v1050 = vadd.f32 %v958, %v1049
        %v1051 = vpop.f32.mrf.mxu0
        %v1052 = vadd.f32 %v960, %v1051
        %1053 = vdwg.mxu0
        %1054 = vmatpush.bf16.msra.mxu0 0
        %1055 = vmatpush.bf16.msra.mxu0 0
        %1056 = vmatpush.bf16.msra.mxu0 0
        %1057 = vmatpush.bf16.msra.mxu0 0
        %1058 = vmatpush.bf16.msra.mxu0 0
        %1059 = vmatpush.bf16.msra.mxu0 0
        %1060 = vmatpush.bf16.msra.mxu0 %v924
        %1061 = vmatpush.bf16.msra.mxu0 %v920
        %1062 = vmatmul.bf16.gmra.mxu0 %v1030
        %v1063 = vpop.f32.mrf.mxu0
        %v1064 = vadd.f32 %v972, %v1063
        %v1065 = vpop.f32.mrf.mxu0
        %v1066 = vadd.f32 %v974, %v1065
        %1067 = vmatmul.bf16.gmra.mxu0 %v1033
        %v1068 = vpop.f32.mrf.mxu0
        %v1069 = vadd.f32 %v977, %v1068
        %v1070 = vpop.f32.mrf.mxu0
        %v1071 = vadd.f32 %v979, %v1070
        %1072 = vdwg.mxu0
        %1073 = vmatpush.bf16.msra.mxu0 0
        %1074 = vmatpush.bf16.msra.mxu0 0
        %1075 = vmatpush.bf16.msra.mxu0 0
        %1076 = vmatpush.bf16.msra.mxu0 0
        %1077 = vmatpush.bf16.msra.mxu0 0
        %1078 = vmatpush.bf16.msra.mxu0 0
        %1079 = vmatpush.bf16.msra.mxu0 %v925
        %1080 = vmatpush.bf16.msra.mxu0 %v921
        %1081 = vmatmul.bf16.gmra.mxu0 %v1030
        %v1082 = vpop.f32.mrf.mxu0
        %v1083 = vadd.f32 %v991, %v1082
        %v1084 = vpop.f32.mrf.mxu0
        %v1085 = vadd.f32 %v993, %v1084
        %1086 = vmatmul.bf16.gmra.mxu0 %v1033
        %v1087 = vpop.f32.mrf.mxu0
        %v1088 = vadd.f32 %v996, %v1087
        %v1089 = vpop.f32.mrf.mxu0
        %v1090 = vadd.f32 %v998, %v1089
        %1091 = vdwg.mxu0
        %1092 = vmatpush.bf16.msra.mxu0 0
        %1093 = vmatpush.bf16.msra.mxu0 0
        %1094 = vmatpush.bf16.msra.mxu0 0
        %1095 = vmatpush.bf16.msra.mxu0 0
        %1096 = vmatpush.bf16.msra.mxu0 0
        %1097 = vmatpush.bf16.msra.mxu0 0
        %1098 = vmatpush.bf16.msra.mxu0 %v926
        %1099 = vmatpush.bf16.msra.mxu0 %v922
        %1100 = vmatmul.bf16.gmra.mxu0 %v1030
        %v1101 = vpop.f32.mrf.mxu0
        %v1102 = vadd.f32 %v1010, %v1101
        %v1103 = vpop.f32.mrf.mxu0
        %v1104 = vadd.f32 %v1012, %v1103
        %1105 = vmatmul.bf16.gmra.mxu0 %v1033
        %v1106 = vpop.f32.mrf.mxu0
        %v1107 = vadd.f32 %v1015, %v1106
        %v1108 = vpop.f32.mrf.mxu0
        %v1109 = vadd.f32 %v1017, %v1108
        %1110 = vdwg.mxu0
        %1112 = vset.pattern.permute.xlu0 0
        %1113 = vperm.xlu0 %1112, %v388
        %v1114 = vpop.permute.xlu0 %1113
        %1117 = vset.pattern.permute.xlu0 0
        %1118 = vperm.xlu0 %1117, %v389
        %v1119 = vpop.permute.xlu0 %1118
        %1122 = vset.pattern.permute.xlu0 0
        %1123 = vperm.xlu0 %1122, %v390
        %v1124 = vpop.permute.xlu0 %1123
        %1127 = vset.pattern.permute.xlu0 0
        %1128 = vperm.xlu0 %1127, %v391
        %v1129 = vpop.permute.xlu0 %1128
        %v1131 = vadd.f32 %v1045, %v1114
        %v1132 = vadd.f32 %v1064, %v1114
        %v1133 = vadd.f32 %v1083, %v1114
        %v1134 = vadd.f32 %v1102, %v1114
        %v1135 = vadd.f32 %v1047, %v1119
        %v1136 = vadd.f32 %v1066, %v1119
        %v1137 = vadd.f32 %v1085, %v1119
        %v1138 = vadd.f32 %v1104, %v1119
        %v1139 = vadd.f32 %v1050, %v1124
        %v1140 = vadd.f32 %v1069, %v1124
        %v1141 = vadd.f32 %v1088, %v1124
        %v1142 = vadd.f32 %v1107, %v1124
        %v1143 = vadd.f32 %v1052, %v1129
        %v1144 = vadd.f32 %v1071, %v1129
        %v1145 = vadd.f32 %v1090, %v1129
        %v1146 = vadd.f32 %v1109, %v1129
        %vm1147 = vcmp.gt.f32.partialorder %v1131, 0.0
        %vm1148 = vcmp.gt.f32.partialorder %v1132, 0.0
        %vm1149 = vcmp.gt.f32.partialorder %v1133, 0.0
        %vm1150 = vcmp.gt.f32.partialorder %v1134, 0.0
        %vm1151 = vcmp.gt.f32.partialorder %v1135, 0.0
        %vm1152 = vcmp.gt.f32.partialorder %v1136, 0.0
        %vm1153 = vcmp.gt.f32.partialorder %v1137, 0.0
        %vm1154 = vcmp.gt.f32.partialorder %v1138, 0.0
        %vm1155 = vcmp.gt.f32.partialorder %v1139, 0.0
        %vm1156 = vcmp.gt.f32.partialorder %v1140, 0.0
        %vm1157 = vcmp.gt.f32.partialorder %v1141, 0.0
        %vm1158 = vcmp.gt.f32.partialorder %v1142, 0.0
        %vm1159 = vcmp.gt.f32.partialorder %v1143, 0.0
        %vm1160 = vcmp.gt.f32.partialorder %v1144, 0.0
        %vm1161 = vcmp.gt.f32.partialorder %v1145, 0.0
        %vm1162 = vcmp.gt.f32.partialorder %v1146, 0.0
        %v1163 = vmul.f32 %v1131, 0.01
        %v1164 = vmul.f32 %v1132, 0.01
        %v1165 = vmul.f32 %v1133, 0.01
        %v1166 = vmul.f32 %v1134, 0.01
        %v1167 = vmul.f32 %v1135, 0.01
        %v1168 = vmul.f32 %v1136, 0.01
        %v1169 = vmul.f32 %v1137, 0.01
        %v1170 = vmul.f32 %v1138, 0.01
        %v1171 = vmul.f32 %v1139, 0.01
        %v1172 = vmul.f32 %v1140, 0.01
        %v1173 = vmul.f32 %v1141, 0.01
        %v1174 = vmul.f32 %v1142, 0.01
        %v1175 = vmul.f32 %v1143, 0.01
        %v1176 = vmul.f32 %v1144, 0.01
        %v1177 = vmul.f32 %v1145, 0.01
        %v1178 = vmul.f32 %v1146, 0.01
        %v1179 = vsel %vm1147, %v1131, %v1163
        %v1180 = vsel %vm1148, %v1132, %v1164
        %v1181 = vsel %vm1149, %v1133, %v1165
        %v1182 = vsel %vm1150, %v1134, %v1166
        %v1183 = vsel %vm1151, %v1135, %v1167
        %v1184 = vsel %vm1152, %v1136, %v1168
        %v1185 = vsel %vm1153, %v1137, %v1169
        %v1186 = vsel %vm1154, %v1138, %v1170
        %v1187 = vsel %vm1155, %v1139, %v1171
        %v1188 = vsel %vm1156, %v1140, %v1172
        %v1189 = vsel %vm1157, %v1141, %v1173
        %v1190 = vsel %vm1158, %v1142, %v1174
        %v1191 = vsel %vm1159, %v1143, %v1175
        %v1192 = vsel %vm1160, %v1144, %v1176
        %v1193 = vsel %vm1161, %v1145, %v1177
        %v1194 = vsel %vm1162, %v1146, %v1178
        %1196 = vset.pattern.permute.xlu0 0
        %1197 = vperm.xlu0 %1196, %v393
        %v1198 = vpop.permute.xlu0 %1197
        %1201 = vset.pattern.permute.xlu0 0
        %1202 = vperm.xlu0 %1201, %v394
        %v1203 = vpop.permute.xlu0 %1202
        %1206 = vset.pattern.permute.xlu0 0
        %1207 = vperm.xlu0 %1206, %v395
        %v1208 = vpop.permute.xlu0 %1207
        %1211 = vset.pattern.permute.xlu0 0
        %1212 = vperm.xlu0 %1211, %v396
        %v1213 = vpop.permute.xlu0 %1212
        %v1215 = vmul.f32 %v1198, %v1179
        %v1216 = vmul.f32 %v1198, %v1180
        %v1217 = vmul.f32 %v1198, %v1181
        %v1218 = vmul.f32 %v1198, %v1182
        %v1219 = vmul.f32 %v1203, %v1183
        %v1220 = vmul.f32 %v1203, %v1184
        %v1221 = vmul.f32 %v1203, %v1185
        %v1222 = vmul.f32 %v1203, %v1186
        %v1223 = vmul.f32 %v1208, %v1187
        %v1224 = vmul.f32 %v1208, %v1188
        %v1225 = vmul.f32 %v1208, %v1189
        %v1226 = vmul.f32 %v1208, %v1190
        %v1227 = vmul.f32 %v1213, %v1191
        %v1228 = vmul.f32 %v1213, %v1192
        %v1229 = vmul.f32 %v1213, %v1193
        %v1230 = vmul.f32 %v1213, %v1194
        %v1231 = vadd.f32 %v1215, %v1219
        %v1232 = vadd.f32 %v1231, %v1223
        %v1233 = vadd.f32 %v1232, %v1227
        %v1234 = vrot.slane %v1233, 4
        %v1235 = vadd.f32 %v1233, %v1234
        %v1236 = vrot.slane %v1235, 2
        %v1237 = vadd.f32 %v1235, %v1236
        %v1238 = vrot.slane %v1237, 1
        %v1239 = vadd.f32 %v1237, %v1238
        %v1240 = vadd.f32 %v1216, %v1220
        %v1241 = vadd.f32 %v1240, %v1224
        %v1242 = vadd.f32 %v1241, %v1228
        %v1243 = vrot.slane %v1242, 4
        %v1244 = vadd.f32 %v1242, %v1243
        %v1245 = vrot.slane %v1244, 2
        %v1246 = vadd.f32 %v1244, %v1245
        %v1247 = vrot.slane %v1246, 1
        %v1248 = vadd.f32 %v1246, %v1247
        %v1249 = vadd.f32 %v1217, %v1221
        %v1250 = vadd.f32 %v1249, %v1225
        %v1251 = vadd.f32 %v1250, %v1229
        %v1252 = vrot.slane %v1251, 4
        %v1253 = vadd.f32 %v1251, %v1252
        %v1254 = vrot.slane %v1253, 2
        %v1255 = vadd.f32 %v1253, %v1254
        %v1256 = vrot.slane %v1255, 1
        %v1257 = vadd.f32 %v1255, %v1256
        %v1258 = vadd.f32 %v1218, %v1222
        %v1259 = vadd.f32 %v1258, %v1226
        %v1260 = vadd.f32 %v1259, %v1230
        %v1261 = vrot.slane %v1260, 4
        %v1262 = vadd.f32 %v1260, %v1261
        %v1263 = vrot.slane %v1262, 2
        %v1264 = vadd.f32 %v1262, %v1263
        %v1265 = vrot.slane %v1264, 1
        %v1266 = vadd.f32 %v1264, %v1265
        %1268 = vset.pattern.permute.xlu0 0
        %1269 = vperm.xlu0 %1268, %v392
        %v1270 = vpop.permute.xlu0 %1269
        %v1272 = vperm.slane %v1270, 0
        %v1273 = vadd.f32 %v1239, %v1272
        %v1274 = vadd.f32 %v1248, %v1272
        %v1275 = vadd.f32 %v1257, %v1272
        %v1276 = vadd.f32 %v1266, %v1272
        %v1277 = vtanh.pop %v1273
        %v1278 = vtanh.pop %v1274
        %v1279 = vtanh.pop %v1275
        %v1280 = vtanh.pop %v1276
        %v1285 = vrot.slane %v1278, 7
        %v1286 = vrot.slane %v1279, 6
        %v1287 = vrot.slane %v1280, 5
        %vm1288 = vcmask 1040384
        %v1289 = vsel %vm1288, %v1277, %v1285
        %vm1290 = vcmask 1042434
        %v1291 = vsel %vm1290, %v1286, %v1287
        %vm1292 = vcmask 1041408
        %v1293 = vsel %vm1292, %v1289, %v1291
        %v1295 = vlaneseq
        %vm1296 = vcmp.ge.s32.totalorder %v1295, 0
        %vm1297 = vcmp.lt.s32.totalorder %v1295, 512
        %vm1298 = vmand %vm1296, %vm1297
        %1299 = vst.msk [vmem:[%s355] sm:$0xf] %vm1298, %v1293
        %s1300 = scalar_lea.vmem %s360, 512
        %v1301 = vld [vmem:[%s1300] sm:$0xff]
        %v1302 = vld [vmem:[%s1300 + $0x8] sm:$0xff]
        %v1303 = vld [vmem:[%s1300 + $0x10] sm:$0xff]
        %v1304 = vld [vmem:[%s1300 + $0x18] sm:$0xff]
        %v1305 = vld [vmem:[%s1300 + $0x20] sm:$0xff]
        %v1306 = vld [vmem:[%s1300 + $0x28] sm:$0xff]
        %v1307 = vld [vmem:[%s1300 + $0x30] sm:$0xff]
        %v1308 = vld [vmem:[%s1300 + $0x38] sm:$0xff]
        %v1309 = vld [vmem:[%s1300 + $0x40] sm:$0xff]
        %v1310 = vld [vmem:[%s1300 + $0x48] sm:$0xff]
        %v1311 = vld [vmem:[%s1300 + $0x50] sm:$0xff]
        %v1312 = vld [vmem:[%s1300 + $0x58] sm:$0xff]
        %v1313 = vld [vmem:[%s1300 + $0x60] sm:$0xff]
        %v1314 = vld [vmem:[%s1300 + $0x68] sm:$0xff]
        %v1315 = vld [vmem:[%s1300 + $0x70] sm:$0xff]
        %v1316 = vld [vmem:[%s1300 + $0x78] sm:$0xff]
        %v1317 = vld [vmem:[%s1300 + $0x80] sm:$0xff]
        %v1318 = vld [vmem:[%s1300 + $0x88] sm:$0xff]
        %v1319 = vld [vmem:[%s1300 + $0x90] sm:$0xff]
        %v1320 = vld [vmem:[%s1300 + $0x98] sm:$0xff]
        %v1321 = vld [vmem:[%s1300 + $0xa0] sm:$0xff]
        %v1322 = vld [vmem:[%s1300 + $0xa8] sm:$0xff]
        %v1323 = vld [vmem:[%s1300 + $0xb0] sm:$0xff]
        %v1324 = vld [vmem:[%s1300 + $0xb8] sm:$0xff]
        %v1325 = vld [vmem:[%s1300 + $0xc0] sm:$0xff]
        %v1326 = vld [vmem:[%s1300 + $0xc8] sm:$0xff]
        %v1327 = vld [vmem:[%s1300 + $0xd0] sm:$0xff]
        %v1328 = vld [vmem:[%s1300 + $0xd8] sm:$0xff]
        %v1329 = vld [vmem:[%s1300 + $0xe0] sm:$0xff]
        %v1330 = vld [vmem:[%s1300 + $0xe8] sm:$0xff]
        %v1331 = vld [vmem:[%s1300 + $0xf0] sm:$0xff]
        %v1332 = vld [vmem:[%s1300 + $0xf8] sm:$0xff]
        %v1333 = vld [vmem:[%s1300 + $0x100] sm:$0xff]
        %v1334 = vld [vmem:[%s1300 + $0x108] sm:$0xff]
        %v1335 = vld [vmem:[%s1300 + $0x110] sm:$0xff]
        %v1336 = vld [vmem:[%s1300 + $0x118] sm:$0xff]
        %v1337 = vld [vmem:[%s1300 + $0x120] sm:$0xff]
        %v1338 = vld [vmem:[%s1300 + $0x128] sm:$0xff]
        %v1339 = vld [vmem:[%s1300 + $0x130] sm:$0xff]
        %v1340 = vld [vmem:[%s1300 + $0x138] sm:$0xff]
        %v1341 = vld [vmem:[%s1300 + $0x140] sm:$0xff]
        %v1342 = vld [vmem:[%s1300 + $0x148] sm:$0xff]
        %v1343 = vld [vmem:[%s1300 + $0x150] sm:$0xff]
        %v1344 = vld [vmem:[%s1300 + $0x158] sm:$0xff]
        %v1345 = vld [vmem:[%s1300 + $0x160] sm:$0xff]
        %v1346 = vld [vmem:[%s1300 + $0x168] sm:$0xff]
        %v1347 = vld [vmem:[%s1300 + $0x170] sm:$0xff]
        %v1348 = vld [vmem:[%s1300 + $0x178] sm:$0xff]
        %v1349 = vld [vmem:[%s1300 + $0x180] sm:$0xff]
        %v1350 = vld [vmem:[%s1300 + $0x188] sm:$0xff]
        %v1351 = vld [vmem:[%s1300 + $0x190] sm:$0xff]
        %v1352 = vld [vmem:[%s1300 + $0x198] sm:$0xff]
        %v1353 = vld [vmem:[%s1300 + $0x1a0] sm:$0xff]
        %v1354 = vld [vmem:[%s1300 + $0x1a8] sm:$0xff]
        %v1355 = vld [vmem:[%s1300 + $0x1b0] sm:$0xff]
        %v1356 = vld [vmem:[%s1300 + $0x1b8] sm:$0xff]
        %v1357 = vld [vmem:[%s1300 + $0x1c0] sm:$0xff]
        %v1358 = vld [vmem:[%s1300 + $0x1c8] sm:$0xff]
        %v1359 = vld [vmem:[%s1300 + $0x1d0] sm:$0xff]
        %v1360 = vld [vmem:[%s1300 + $0x1d8] sm:$0xff]
        %v1361 = vld [vmem:[%s1300 + $0x1e0] sm:$0xff]
        %v1362 = vld [vmem:[%s1300 + $0x1e8] sm:$0xff]
        %v1363 = vld [vmem:[%s1300 + $0x1f0] sm:$0xff]
        %v1364 = vld [vmem:[%s1300 + $0x1f8] sm:$0xff]
        %v1365 = vpack.c.bf16 %v1302, %v1301
        %v1366 = vpack.c.bf16 %v1304, %v1303
        %v1367 = vpack.c.bf16 %v1306, %v1305
        %v1368 = vpack.c.bf16 %v1308, %v1307
        %v1369 = vpack.c.bf16 %v1310, %v1309
        %v1370 = vpack.c.bf16 %v1312, %v1311
        %v1371 = vpack.c.bf16 %v1314, %v1313
        %v1372 = vpack.c.bf16 %v1316, %v1315
        %v1373 = vpack.c.bf16 %v1318, %v1317
        %v1374 = vpack.c.bf16 %v1320, %v1319
        %v1375 = vpack.c.bf16 %v1322, %v1321
        %v1376 = vpack.c.bf16 %v1324, %v1323
        %v1377 = vpack.c.bf16 %v1326, %v1325
        %v1378 = vpack.c.bf16 %v1328, %v1327
        %v1379 = vpack.c.bf16 %v1330, %v1329
        %v1380 = vpack.c.bf16 %v1332, %v1331
        %v1381 = vpack.c.bf16 %v1334, %v1333
        %v1382 = vpack.c.bf16 %v1336, %v1335
        %v1383 = vpack.c.bf16 %v1338, %v1337
        %v1384 = vpack.c.bf16 %v1340, %v1339
        %v1385 = vpack.c.bf16 %v1342, %v1341
        %v1386 = vpack.c.bf16 %v1344, %v1343
        %v1387 = vpack.c.bf16 %v1346, %v1345
        %v1388 = vpack.c.bf16 %v1348, %v1347
        %v1389 = vpack.c.bf16 %v1350, %v1349
        %v1390 = vpack.c.bf16 %v1352, %v1351
        %v1391 = vpack.c.bf16 %v1354, %v1353
        %v1392 = vpack.c.bf16 %v1356, %v1355
        %v1393 = vpack.c.bf16 %v1358, %v1357
        %v1394 = vpack.c.bf16 %v1360, %v1359
        %v1395 = vpack.c.bf16 %v1362, %v1361
        %v1396 = vpack.c.bf16 %v1364, %v1363
        %v1398 = vsel %vm523, %v1365, 0
        %v1401 = vsel %vm523, %v1366, 0
        %v1404 = vsel %vm523, %v1367, 0
        %v1407 = vsel %vm523, %v1368, 0
        %v1410 = vsel %vm523, %v1369, 0
        %v1413 = vsel %vm523, %v1370, 0
        %v1416 = vsel %vm523, %v1371, 0
        %v1419 = vsel %vm523, %v1372, 0
        %v1422 = vsel %vm523, %v1373, 0
        %v1425 = vsel %vm523, %v1374, 0
        %v1428 = vsel %vm523, %v1375, 0
        %v1431 = vsel %vm523, %v1376, 0
        %v1434 = vsel %vm523, %v1377, 0
        %v1437 = vsel %vm523, %v1378, 0
        %v1440 = vsel %vm523, %v1379, 0
        %v1443 = vsel %vm523, %v1380, 0
        %v1446 = vsel %vm523, %v1381, 0
        %v1449 = vsel %vm523, %v1382, 0
        %v1452 = vsel %vm523, %v1383, 0
        %v1455 = vsel %vm523, %v1384, 0
        %v1458 = vsel %vm523, %v1385, 0
        %v1461 = vsel %vm523, %v1386, 0
        %v1464 = vsel %vm523, %v1387, 0
        %v1467 = vsel %vm523, %v1388, 0
        %v1470 = vsel %vm523, %v1389, 0
        %v1473 = vsel %vm523, %v1390, 0
        %v1476 = vsel %vm523, %v1391, 0
        %v1479 = vsel %vm523, %v1392, 0
        %v1482 = vsel %vm523, %v1393, 0
        %v1485 = vsel %vm523, %v1394, 0
        %v1488 = vsel %vm523, %v1395, 0
        %v1491 = vsel %vm523, %v1396, 0
        %1493 = vmatpush.bf16.xpose.msra.mxu0 %v1419
        %1494 = vmatpush.bf16.xpose.msra.mxu0 %v1416
        %1495 = vmatpush.bf16.xpose.msra.mxu0 %v1413
        %1496 = vmatpush.bf16.xpose.msra.mxu0 %v1410
        %1497 = vmatpush.bf16.xpose.msra.mxu0 %v1407
        %1498 = vmatpush.bf16.xpose.msra.mxu0 %v1404
        %1499 = vmatpush.bf16.xpose.msra.mxu0 %v1401
        %1500 = vmatpush.bf16.xpose.msra.mxu0 %v1398
        %1501 = vmatmul.bf16.gmra.mxu0 %v525
        %v1502 = vpop.f32.mrf.mxu0
        %v1503 = vadd.f32 %v496, %v1502
        %v1504 = vpop.f32.mrf.mxu0
        %v1505 = vadd.f32 %v501, %v1504
        %1506 = vmatmul.bf16.gmra.mxu0 %v528
        %v1507 = vpop.f32.mrf.mxu0
        %v1508 = vadd.f32 %v506, %v1507
        %v1509 = vpop.f32.mrf.mxu0
        %v1510 = vadd.f32 %v511, %v1509
        %1511 = vdwg.mxu0
        %1512 = vmatpush.bf16.xpose.msra.mxu0 %v1443
        %1513 = vmatpush.bf16.xpose.msra.mxu0 %v1440
        %1514 = vmatpush.bf16.xpose.msra.mxu0 %v1437
        %1515 = vmatpush.bf16.xpose.msra.mxu0 %v1434
        %1516 = vmatpush.bf16.xpose.msra.mxu0 %v1431
        %1517 = vmatpush.bf16.xpose.msra.mxu0 %v1428
        %1518 = vmatpush.bf16.xpose.msra.mxu0 %v1425
        %1519 = vmatpush.bf16.xpose.msra.mxu0 %v1422
        %1520 = vmatmul.bf16.gmra.mxu0 %v525
        %v1521 = vpop.f32.mrf.mxu0
        %v1522 = vadd.f32 %v496, %v1521
        %v1523 = vpop.f32.mrf.mxu0
        %v1524 = vadd.f32 %v501, %v1523
        %1525 = vmatmul.bf16.gmra.mxu0 %v528
        %v1526 = vpop.f32.mrf.mxu0
        %v1527 = vadd.f32 %v506, %v1526
        %v1528 = vpop.f32.mrf.mxu0
        %v1529 = vadd.f32 %v511, %v1528
        %1530 = vdwg.mxu0
        %1531 = vmatpush.bf16.xpose.msra.mxu0 %v1467
        %1532 = vmatpush.bf16.xpose.msra.mxu0 %v1464
        %1533 = vmatpush.bf16.xpose.msra.mxu0 %v1461
        %1534 = vmatpush.bf16.xpose.msra.mxu0 %v1458
        %1535 = vmatpush.bf16.xpose.msra.mxu0 %v1455
        %1536 = vmatpush.bf16.xpose.msra.mxu0 %v1452
        %1537 = vmatpush.bf16.xpose.msra.mxu0 %v1449
        %1538 = vmatpush.bf16.xpose.msra.mxu0 %v1446
        %1539 = vmatmul.bf16.gmra.mxu0 %v525
        %v1540 = vpop.f32.mrf.mxu0
        %v1541 = vadd.f32 %v496, %v1540
        %v1542 = vpop.f32.mrf.mxu0
        %v1543 = vadd.f32 %v501, %v1542
        %1544 = vmatmul.bf16.gmra.mxu0 %v528
        %v1545 = vpop.f32.mrf.mxu0
        %v1546 = vadd.f32 %v506, %v1545
        %v1547 = vpop.f32.mrf.mxu0
        %v1548 = vadd.f32 %v511, %v1547
        %1549 = vdwg.mxu0
        %1550 = vmatpush.bf16.xpose.msra.mxu0 %v1491
        %1551 = vmatpush.bf16.xpose.msra.mxu0 %v1488
        %1552 = vmatpush.bf16.xpose.msra.mxu0 %v1485
        %1553 = vmatpush.bf16.xpose.msra.mxu0 %v1482
        %1554 = vmatpush.bf16.xpose.msra.mxu0 %v1479
        %1555 = vmatpush.bf16.xpose.msra.mxu0 %v1476
        %1556 = vmatpush.bf16.xpose.msra.mxu0 %v1473
        %1557 = vmatpush.bf16.xpose.msra.mxu0 %v1470
        %1558 = vmatmul.bf16.gmra.mxu0 %v525
        %v1559 = vpop.f32.mrf.mxu0
        %v1560 = vadd.f32 %v496, %v1559
        %v1561 = vpop.f32.mrf.mxu0
        %v1562 = vadd.f32 %v501, %v1561
        %1563 = vmatmul.bf16.gmra.mxu0 %v528
        %v1564 = vpop.f32.mrf.mxu0
        %v1565 = vadd.f32 %v506, %v1564
        %v1566 = vpop.f32.mrf.mxu0
        %v1567 = vadd.f32 %v511, %v1566
        %1568 = vdwg.mxu0
        %vm1569 = vcmp.gt.f32.partialorder %v1503, 0.0
        %vm1570 = vcmp.gt.f32.partialorder %v1522, 0.0
        %vm1571 = vcmp.gt.f32.partialorder %v1541, 0.0
        %vm1572 = vcmp.gt.f32.partialorder %v1560, 0.0
        %vm1573 = vcmp.gt.f32.partialorder %v1505, 0.0
        %vm1574 = vcmp.gt.f32.partialorder %v1524, 0.0
        %vm1575 = vcmp.gt.f32.partialorder %v1543, 0.0
        %vm1576 = vcmp.gt.f32.partialorder %v1562, 0.0
        %vm1577 = vcmp.gt.f32.partialorder %v1508, 0.0
        %vm1578 = vcmp.gt.f32.partialorder %v1527, 0.0
        %vm1579 = vcmp.gt.f32.partialorder %v1546, 0.0
        %vm1580 = vcmp.gt.f32.partialorder %v1565, 0.0
        %vm1581 = vcmp.gt.f32.partialorder %v1510, 0.0
        %vm1582 = vcmp.gt.f32.partialorder %v1529, 0.0
        %vm1583 = vcmp.gt.f32.partialorder %v1548, 0.0
        %vm1584 = vcmp.gt.f32.partialorder %v1567, 0.0
        %v1585 = vmul.f32 %v1503, 0.01
        %v1586 = vmul.f32 %v1522, 0.01
        %v1587 = vmul.f32 %v1541, 0.01
        %v1588 = vmul.f32 %v1560, 0.01
        %v1589 = vmul.f32 %v1505, 0.01
        %v1590 = vmul.f32 %v1524, 0.01
        %v1591 = vmul.f32 %v1543, 0.01
        %v1592 = vmul.f32 %v1562, 0.01
        %v1593 = vmul.f32 %v1508, 0.01
        %v1594 = vmul.f32 %v1527, 0.01
        %v1595 = vmul.f32 %v1546, 0.01
        %v1596 = vmul.f32 %v1565, 0.01
        %v1597 = vmul.f32 %v1510, 0.01
        %v1598 = vmul.f32 %v1529, 0.01
        %v1599 = vmul.f32 %v1548, 0.01
        %v1600 = vmul.f32 %v1567, 0.01
        %v1601 = vsel %vm1569, %v1503, %v1585
        %v1602 = vsel %vm1570, %v1522, %v1586
        %v1603 = vsel %vm1571, %v1541, %v1587
        %v1604 = vsel %vm1572, %v1560, %v1588
        %v1605 = vsel %vm1573, %v1505, %v1589
        %v1606 = vsel %vm1574, %v1524, %v1590
        %v1607 = vsel %vm1575, %v1543, %v1591
        %v1608 = vsel %vm1576, %v1562, %v1592
        %v1609 = vsel %vm1577, %v1508, %v1593
        %v1610 = vsel %vm1578, %v1527, %v1594
        %v1611 = vsel %vm1579, %v1546, %v1595
        %v1612 = vsel %vm1580, %v1565, %v1596
        %v1613 = vsel %vm1581, %v1510, %v1597
        %v1614 = vsel %vm1582, %v1529, %v1598
        %v1615 = vsel %vm1583, %v1548, %v1599
        %v1616 = vsel %vm1584, %v1567, %v1600
        %v1617 = vpack.c.bf16 %v1605, %v1601
        %v1618 = vpack.c.bf16 %v1606, %v1602
        %v1619 = vpack.c.bf16 %v1607, %v1603
        %v1620 = vpack.c.bf16 %v1608, %v1604
        %v1621 = vpack.c.bf16 %v1613, %v1609
        %v1622 = vpack.c.bf16 %v1614, %v1610
        %v1623 = vpack.c.bf16 %v1615, %v1611
        %v1624 = vpack.c.bf16 %v1616, %v1612
        %1625 = vmatpush.bf16.msra.mxu0 0
        %1626 = vmatpush.bf16.msra.mxu0 0
        %1627 = vmatpush.bf16.msra.mxu0 0
        %1628 = vmatpush.bf16.msra.mxu0 0
        %1629 = vmatpush.bf16.msra.mxu0 0
        %1630 = vmatpush.bf16.msra.mxu0 0
        %1631 = vmatpush.bf16.msra.mxu0 %v1621
        %1632 = vmatpush.bf16.msra.mxu0 %v1617
        %1633 = vmatmul.bf16.gmra.mxu0 %v790
        %v1634 = vpop.f32.mrf.mxu0
        %v1635 = vadd.f32 %v761, %v1634
        %v1636 = vpop.f32.mrf.mxu0
        %v1637 = vadd.f32 %v766, %v1636
        %1638 = vmatmul.bf16.gmra.mxu0 %v793
        %v1639 = vpop.f32.mrf.mxu0
        %v1640 = vadd.f32 %v771, %v1639
        %v1641 = vpop.f32.mrf.mxu0
        %v1642 = vadd.f32 %v776, %v1641
        %1643 = vdwg.mxu0
        %1644 = vmatpush.bf16.msra.mxu0 0
        %1645 = vmatpush.bf16.msra.mxu0 0
        %1646 = vmatpush.bf16.msra.mxu0 0
        %1647 = vmatpush.bf16.msra.mxu0 0
        %1648 = vmatpush.bf16.msra.mxu0 0
        %1649 = vmatpush.bf16.msra.mxu0 0
        %1650 = vmatpush.bf16.msra.mxu0 %v1622
        %1651 = vmatpush.bf16.msra.mxu0 %v1618
        %1652 = vmatmul.bf16.gmra.mxu0 %v790
        %v1653 = vpop.f32.mrf.mxu0
        %v1654 = vadd.f32 %v761, %v1653
        %v1655 = vpop.f32.mrf.mxu0
        %v1656 = vadd.f32 %v766, %v1655
        %1657 = vmatmul.bf16.gmra.mxu0 %v793
        %v1658 = vpop.f32.mrf.mxu0
        %v1659 = vadd.f32 %v771, %v1658
        %v1660 = vpop.f32.mrf.mxu0
        %v1661 = vadd.f32 %v776, %v1660
        %1662 = vdwg.mxu0
        %1663 = vmatpush.bf16.msra.mxu0 0
        %1664 = vmatpush.bf16.msra.mxu0 0
        %1665 = vmatpush.bf16.msra.mxu0 0
        %1666 = vmatpush.bf16.msra.mxu0 0
        %1667 = vmatpush.bf16.msra.mxu0 0
        %1668 = vmatpush.bf16.msra.mxu0 0
        %1669 = vmatpush.bf16.msra.mxu0 %v1623
        %1670 = vmatpush.bf16.msra.mxu0 %v1619
        %1671 = vmatmul.bf16.gmra.mxu0 %v790
        %v1672 = vpop.f32.mrf.mxu0
        %v1673 = vadd.f32 %v761, %v1672
        %v1674 = vpop.f32.mrf.mxu0
        %v1675 = vadd.f32 %v766, %v1674
        %1676 = vmatmul.bf16.gmra.mxu0 %v793
        %v1677 = vpop.f32.mrf.mxu0
        %v1678 = vadd.f32 %v771, %v1677
        %v1679 = vpop.f32.mrf.mxu0
        %v1680 = vadd.f32 %v776, %v1679
        %1681 = vdwg.mxu0
        %1682 = vmatpush.bf16.msra.mxu0 0
        %1683 = vmatpush.bf16.msra.mxu0 0
        %1684 = vmatpush.bf16.msra.mxu0 0
        %1685 = vmatpush.bf16.msra.mxu0 0
        %1686 = vmatpush.bf16.msra.mxu0 0
        %1687 = vmatpush.bf16.msra.mxu0 0
        %1688 = vmatpush.bf16.msra.mxu0 %v1624
        %1689 = vmatpush.bf16.msra.mxu0 %v1620
        %1690 = vmatmul.bf16.gmra.mxu0 %v790
        %v1691 = vpop.f32.mrf.mxu0
        %v1692 = vadd.f32 %v761, %v1691
        %v1693 = vpop.f32.mrf.mxu0
        %v1694 = vadd.f32 %v766, %v1693
        %1695 = vmatmul.bf16.gmra.mxu0 %v793
        %v1696 = vpop.f32.mrf.mxu0
        %v1697 = vadd.f32 %v771, %v1696
        %v1698 = vpop.f32.mrf.mxu0
        %v1699 = vadd.f32 %v776, %v1698
        %1700 = vdwg.mxu0
        %vm1701 = vcmp.gt.f32.partialorder %v1635, 0.0
        %vm1702 = vcmp.gt.f32.partialorder %v1654, 0.0
        %vm1703 = vcmp.gt.f32.partialorder %v1673, 0.0
        %vm1704 = vcmp.gt.f32.partialorder %v1692, 0.0
        %vm1705 = vcmp.gt.f32.partialorder %v1637, 0.0
        %vm1706 = vcmp.gt.f32.partialorder %v1656, 0.0
        %vm1707 = vcmp.gt.f32.partialorder %v1675, 0.0
        %vm1708 = vcmp.gt.f32.partialorder %v1694, 0.0
        %vm1709 = vcmp.gt.f32.partialorder %v1640, 0.0
        %vm1710 = vcmp.gt.f32.partialorder %v1659, 0.0
        %vm1711 = vcmp.gt.f32.partialorder %v1678, 0.0
        %vm1712 = vcmp.gt.f32.partialorder %v1697, 0.0
        %vm1713 = vcmp.gt.f32.partialorder %v1642, 0.0
        %vm1714 = vcmp.gt.f32.partialorder %v1661, 0.0
        %vm1715 = vcmp.gt.f32.partialorder %v1680, 0.0
        %vm1716 = vcmp.gt.f32.partialorder %v1699, 0.0
        %v1717 = vmul.f32 %v1635, 0.01
        %v1718 = vmul.f32 %v1654, 0.01
        %v1719 = vmul.f32 %v1673, 0.01
        %v1720 = vmul.f32 %v1692, 0.01
        %v1721 = vmul.f32 %v1637, 0.01
        %v1722 = vmul.f32 %v1656, 0.01
        %v1723 = vmul.f32 %v1675, 0.01
        %v1724 = vmul.f32 %v1694, 0.01
        %v1725 = vmul.f32 %v1640, 0.01
        %v1726 = vmul.f32 %v1659, 0.01
        %v1727 = vmul.f32 %v1678, 0.01
        %v1728 = vmul.f32 %v1697, 0.01
        %v1729 = vmul.f32 %v1642, 0.01
        %v1730 = vmul.f32 %v1661, 0.01
        %v1731 = vmul.f32 %v1680, 0.01
        %v1732 = vmul.f32 %v1699, 0.01
        %v1733 = vsel %vm1701, %v1635, %v1717
        %v1734 = vsel %vm1702, %v1654, %v1718
        %v1735 = vsel %vm1703, %v1673, %v1719
        %v1736 = vsel %vm1704, %v1692, %v1720
        %v1737 = vsel %vm1705, %v1637, %v1721
        %v1738 = vsel %vm1706, %v1656, %v1722
        %v1739 = vsel %vm1707, %v1675, %v1723
        %v1740 = vsel %vm1708, %v1694, %v1724
        %v1741 = vsel %vm1709, %v1640, %v1725
        %v1742 = vsel %vm1710, %v1659, %v1726
        %v1743 = vsel %vm1711, %v1678, %v1727
        %v1744 = vsel %vm1712, %v1697, %v1728
        %v1745 = vsel %vm1713, %v1642, %v1729
        %v1746 = vsel %vm1714, %v1661, %v1730
        %v1747 = vsel %vm1715, %v1680, %v1731
        %v1748 = vsel %vm1716, %v1699, %v1732
        %v1749 = vpack.c.bf16 %v1737, %v1733
        %v1750 = vpack.c.bf16 %v1738, %v1734
        %v1751 = vpack.c.bf16 %v1739, %v1735
        %v1752 = vpack.c.bf16 %v1740, %v1736
        %v1753 = vpack.c.bf16 %v1745, %v1741
        %v1754 = vpack.c.bf16 %v1746, %v1742
        %v1755 = vpack.c.bf16 %v1747, %v1743
        %v1756 = vpack.c.bf16 %v1748, %v1744
        %1757 = vmatpush.bf16.xpose.msra.mxu0 %v1419
        %1758 = vmatpush.bf16.xpose.msra.mxu0 %v1416
        %1759 = vmatpush.bf16.xpose.msra.mxu0 %v1413
        %1760 = vmatpush.bf16.xpose.msra.mxu0 %v1410
        %1761 = vmatpush.bf16.xpose.msra.mxu0 %v1407
        %1762 = vmatpush.bf16.xpose.msra.mxu0 %v1404
        %1763 = vmatpush.bf16.xpose.msra.mxu0 %v1401
        %1764 = vmatpush.bf16.xpose.msra.mxu0 %v1398
        %1765 = vmatmul.bf16.gmra.mxu0 %v938
        %v1766 = vpop.f32.mrf.mxu0
        %v1767 = vadd.f32 0.0, %v1766
        %v1768 = vpop.f32.mrf.mxu0
        %v1769 = vadd.f32 0.0, %v1768
        %1770 = vmatmul.bf16.gmra.mxu0 %v941
        %v1771 = vpop.f32.mrf.mxu0
        %v1772 = vadd.f32 0.0, %v1771
        %v1773 = vpop.f32.mrf.mxu0
        %v1774 = vadd.f32 0.0, %v1773
        %1775 = vdwg.mxu0
        %1776 = vmatpush.bf16.xpose.msra.mxu0 %v1443
        %1777 = vmatpush.bf16.xpose.msra.mxu0 %v1440
        %1778 = vmatpush.bf16.xpose.msra.mxu0 %v1437
        %1779 = vmatpush.bf16.xpose.msra.mxu0 %v1434
        %1780 = vmatpush.bf16.xpose.msra.mxu0 %v1431
        %1781 = vmatpush.bf16.xpose.msra.mxu0 %v1428
        %1782 = vmatpush.bf16.xpose.msra.mxu0 %v1425
        %1783 = vmatpush.bf16.xpose.msra.mxu0 %v1422
        %1784 = vmatmul.bf16.gmra.mxu0 %v938
        %v1785 = vpop.f32.mrf.mxu0
        %v1786 = vadd.f32 0.0, %v1785
        %v1787 = vpop.f32.mrf.mxu0
        %v1788 = vadd.f32 0.0, %v1787
        %1789 = vmatmul.bf16.gmra.mxu0 %v941
        %v1790 = vpop.f32.mrf.mxu0
        %v1791 = vadd.f32 0.0, %v1790
        %v1792 = vpop.f32.mrf.mxu0
        %v1793 = vadd.f32 0.0, %v1792
        %1794 = vdwg.mxu0
        %1795 = vmatpush.bf16.xpose.msra.mxu0 %v1467
        %1796 = vmatpush.bf16.xpose.msra.mxu0 %v1464
        %1797 = vmatpush.bf16.xpose.msra.mxu0 %v1461
        %1798 = vmatpush.bf16.xpose.msra.mxu0 %v1458
        %1799 = vmatpush.bf16.xpose.msra.mxu0 %v1455
        %1800 = vmatpush.bf16.xpose.msra.mxu0 %v1452
        %1801 = vmatpush.bf16.xpose.msra.mxu0 %v1449
        %1802 = vmatpush.bf16.xpose.msra.mxu0 %v1446
        %1803 = vmatmul.bf16.gmra.mxu0 %v938
        %v1804 = vpop.f32.mrf.mxu0
        %v1805 = vadd.f32 0.0, %v1804
        %v1806 = vpop.f32.mrf.mxu0
        %v1807 = vadd.f32 0.0, %v1806
        %1808 = vmatmul.bf16.gmra.mxu0 %v941
        %v1809 = vpop.f32.mrf.mxu0
        %v1810 = vadd.f32 0.0, %v1809
        %v1811 = vpop.f32.mrf.mxu0
        %v1812 = vadd.f32 0.0, %v1811
        %1813 = vdwg.mxu0
        %1814 = vmatpush.bf16.xpose.msra.mxu0 %v1491
        %1815 = vmatpush.bf16.xpose.msra.mxu0 %v1488
        %1816 = vmatpush.bf16.xpose.msra.mxu0 %v1485
        %1817 = vmatpush.bf16.xpose.msra.mxu0 %v1482
        %1818 = vmatpush.bf16.xpose.msra.mxu0 %v1479
        %1819 = vmatpush.bf16.xpose.msra.mxu0 %v1476
        %1820 = vmatpush.bf16.xpose.msra.mxu0 %v1473
        %1821 = vmatpush.bf16.xpose.msra.mxu0 %v1470
        %1822 = vmatmul.bf16.gmra.mxu0 %v938
        %v1823 = vpop.f32.mrf.mxu0
        %v1824 = vadd.f32 0.0, %v1823
        %v1825 = vpop.f32.mrf.mxu0
        %v1826 = vadd.f32 0.0, %v1825
        %1827 = vmatmul.bf16.gmra.mxu0 %v941
        %v1828 = vpop.f32.mrf.mxu0
        %v1829 = vadd.f32 0.0, %v1828
        %v1830 = vpop.f32.mrf.mxu0
        %v1831 = vadd.f32 0.0, %v1830
        %1832 = vdwg.mxu0
        %1833 = vmatpush.bf16.msra.mxu0 0
        %1834 = vmatpush.bf16.msra.mxu0 0
        %1835 = vmatpush.bf16.msra.mxu0 0
        %1836 = vmatpush.bf16.msra.mxu0 0
        %1837 = vmatpush.bf16.msra.mxu0 0
        %1838 = vmatpush.bf16.msra.mxu0 0
        %1839 = vmatpush.bf16.msra.mxu0 %v1753
        %1840 = vmatpush.bf16.msra.mxu0 %v1749
        %1841 = vmatmul.bf16.gmra.mxu0 %v1030
        %v1842 = vpop.f32.mrf.mxu0
        %v1843 = vadd.f32 %v1767, %v1842
        %v1844 = vpop.f32.mrf.mxu0
        %v1845 = vadd.f32 %v1769, %v1844
        %1846 = vmatmul.bf16.gmra.mxu0 %v1033
        %v1847 = vpop.f32.mrf.mxu0
        %v1848 = vadd.f32 %v1772, %v1847
        %v1849 = vpop.f32.mrf.mxu0
        %v1850 = vadd.f32 %v1774, %v1849
        %1851 = vdwg.mxu0
        %1852 = vmatpush.bf16.msra.mxu0 0
        %1853 = vmatpush.bf16.msra.mxu0 0
        %1854 = vmatpush.bf16.msra.mxu0 0
        %1855 = vmatpush.bf16.msra.mxu0 0
        %1856 = vmatpush.bf16.msra.mxu0 0
        %1857 = vmatpush.bf16.msra.mxu0 0
        %1858 = vmatpush.bf16.msra.mxu0 %v1754
        %1859 = vmatpush.bf16.msra.mxu0 %v1750
        %1860 = vmatmul.bf16.gmra.mxu0 %v1030
        %v1861 = vpop.f32.mrf.mxu0
        %v1862 = vadd.f32 %v1786, %v1861
        %v1863 = vpop.f32.mrf.mxu0
        %v1864 = vadd.f32 %v1788, %v1863
        %1865 = vmatmul.bf16.gmra.mxu0 %v1033
        %v1866 = vpop.f32.mrf.mxu0
        %v1867 = vadd.f32 %v1791, %v1866
        %v1868 = vpop.f32.mrf.mxu0
        %v1869 = vadd.f32 %v1793, %v1868
        %1870 = vdwg.mxu0
        %1871 = vmatpush.bf16.msra.mxu0 0
        %1872 = vmatpush.bf16.msra.mxu0 0
        %1873 = vmatpush.bf16.msra.mxu0 0
        %1874 = vmatpush.bf16.msra.mxu0 0
        %1875 = vmatpush.bf16.msra.mxu0 0
        %1876 = vmatpush.bf16.msra.mxu0 0
        %1877 = vmatpush.bf16.msra.mxu0 %v1755
        %1878 = vmatpush.bf16.msra.mxu0 %v1751
        %1879 = vmatmul.bf16.gmra.mxu0 %v1030
        %v1880 = vpop.f32.mrf.mxu0
        %v1881 = vadd.f32 %v1805, %v1880
        %v1882 = vpop.f32.mrf.mxu0
        %v1883 = vadd.f32 %v1807, %v1882
        %1884 = vmatmul.bf16.gmra.mxu0 %v1033
        %v1885 = vpop.f32.mrf.mxu0
        %v1886 = vadd.f32 %v1810, %v1885
        %v1887 = vpop.f32.mrf.mxu0
        %v1888 = vadd.f32 %v1812, %v1887
        %1889 = vdwg.mxu0
        %1890 = vmatpush.bf16.msra.mxu0 0
        %1891 = vmatpush.bf16.msra.mxu0 0
        %1892 = vmatpush.bf16.msra.mxu0 0
        %1893 = vmatpush.bf16.msra.mxu0 0
        %1894 = vmatpush.bf16.msra.mxu0 0
        %1895 = vmatpush.bf16.msra.mxu0 0
        %1896 = vmatpush.bf16.msra.mxu0 %v1756
        %1897 = vmatpush.bf16.msra.mxu0 %v1752
        %1898 = vmatmul.bf16.gmra.mxu0 %v1030
        %v1899 = vpop.f32.mrf.mxu0
        %v1900 = vadd.f32 %v1824, %v1899
        %v1901 = vpop.f32.mrf.mxu0
        %v1902 = vadd.f32 %v1826, %v1901
        %1903 = vmatmul.bf16.gmra.mxu0 %v1033
        %v1904 = vpop.f32.mrf.mxu0
        %v1905 = vadd.f32 %v1829, %v1904
        %v1906 = vpop.f32.mrf.mxu0
        %v1907 = vadd.f32 %v1831, %v1906
        %1908 = vdwg.mxu0
        %v1909 = vadd.f32 %v1843, %v1114
        %v1910 = vadd.f32 %v1862, %v1114
        %v1911 = vadd.f32 %v1881, %v1114
        %v1912 = vadd.f32 %v1900, %v1114
        %v1913 = vadd.f32 %v1845, %v1119
        %v1914 = vadd.f32 %v1864, %v1119
        %v1915 = vadd.f32 %v1883, %v1119
        %v1916 = vadd.f32 %v1902, %v1119
        %v1917 = vadd.f32 %v1848, %v1124
        %v1918 = vadd.f32 %v1867, %v1124
        %v1919 = vadd.f32 %v1886, %v1124
        %v1920 = vadd.f32 %v1905, %v1124
        %v1921 = vadd.f32 %v1850, %v1129
        %v1922 = vadd.f32 %v1869, %v1129
        %v1923 = vadd.f32 %v1888, %v1129
        %v1924 = vadd.f32 %v1907, %v1129
        %vm1925 = vcmp.gt.f32.partialorder %v1909, 0.0
        %vm1926 = vcmp.gt.f32.partialorder %v1910, 0.0
        %vm1927 = vcmp.gt.f32.partialorder %v1911, 0.0
        %vm1928 = vcmp.gt.f32.partialorder %v1912, 0.0
        %vm1929 = vcmp.gt.f32.partialorder %v1913, 0.0
        %vm1930 = vcmp.gt.f32.partialorder %v1914, 0.0
        %vm1931 = vcmp.gt.f32.partialorder %v1915, 0.0
        %vm1932 = vcmp.gt.f32.partialorder %v1916, 0.0
        %vm1933 = vcmp.gt.f32.partialorder %v1917, 0.0
        %vm1934 = vcmp.gt.f32.partialorder %v1918, 0.0
        %vm1935 = vcmp.gt.f32.partialorder %v1919, 0.0
        %vm1936 = vcmp.gt.f32.partialorder %v1920, 0.0
        %vm1937 = vcmp.gt.f32.partialorder %v1921, 0.0
        %vm1938 = vcmp.gt.f32.partialorder %v1922, 0.0
        %vm1939 = vcmp.gt.f32.partialorder %v1923, 0.0
        %vm1940 = vcmp.gt.f32.partialorder %v1924, 0.0
        %v1941 = vmul.f32 %v1909, 0.01
        %v1942 = vmul.f32 %v1910, 0.01
        %v1943 = vmul.f32 %v1911, 0.01
        %v1944 = vmul.f32 %v1912, 0.01
        %v1945 = vmul.f32 %v1913, 0.01
        %v1946 = vmul.f32 %v1914, 0.01
        %v1947 = vmul.f32 %v1915, 0.01
        %v1948 = vmul.f32 %v1916, 0.01
        %v1949 = vmul.f32 %v1917, 0.01
        %v1950 = vmul.f32 %v1918, 0.01
        %v1951 = vmul.f32 %v1919, 0.01
        %v1952 = vmul.f32 %v1920, 0.01
        %v1953 = vmul.f32 %v1921, 0.01
        %v1954 = vmul.f32 %v1922, 0.01
        %v1955 = vmul.f32 %v1923, 0.01
        %v1956 = vmul.f32 %v1924, 0.01
        %v1957 = vsel %vm1925, %v1909, %v1941
        %v1958 = vsel %vm1926, %v1910, %v1942
        %v1959 = vsel %vm1927, %v1911, %v1943
        %v1960 = vsel %vm1928, %v1912, %v1944
        %v1961 = vsel %vm1929, %v1913, %v1945
        %v1962 = vsel %vm1930, %v1914, %v1946
        %v1963 = vsel %vm1931, %v1915, %v1947
        %v1964 = vsel %vm1932, %v1916, %v1948
        %v1965 = vsel %vm1933, %v1917, %v1949
        %v1966 = vsel %vm1934, %v1918, %v1950
        %v1967 = vsel %vm1935, %v1919, %v1951
        %v1968 = vsel %vm1936, %v1920, %v1952
        %v1969 = vsel %vm1937, %v1921, %v1953
        %v1970 = vsel %vm1938, %v1922, %v1954
        %v1971 = vsel %vm1939, %v1923, %v1955
        %v1972 = vsel %vm1940, %v1924, %v1956
        %v1973 = vmul.f32 %v1198, %v1957
        %v1974 = vmul.f32 %v1198, %v1958
        %v1975 = vmul.f32 %v1198, %v1959
        %v1976 = vmul.f32 %v1198, %v1960
        %v1977 = vmul.f32 %v1203, %v1961
        %v1978 = vmul.f32 %v1203, %v1962
        %v1979 = vmul.f32 %v1203, %v1963
        %v1980 = vmul.f32 %v1203, %v1964
        %v1981 = vmul.f32 %v1208, %v1965
        %v1982 = vmul.f32 %v1208, %v1966
        %v1983 = vmul.f32 %v1208, %v1967
        %v1984 = vmul.f32 %v1208, %v1968
        %v1985 = vmul.f32 %v1213, %v1969
        %v1986 = vmul.f32 %v1213, %v1970
        %v1987 = vmul.f32 %v1213, %v1971
        %v1988 = vmul.f32 %v1213, %v1972
        %v1989 = vadd.f32 %v1973, %v1977
        %v1990 = vadd.f32 %v1989, %v1981
        %v1991 = vadd.f32 %v1990, %v1985
        %v1992 = vrot.slane %v1991, 4
        %v1993 = vadd.f32 %v1991, %v1992
        %v1994 = vrot.slane %v1993, 2
        %v1995 = vadd.f32 %v1993, %v1994
        %v1996 = vrot.slane %v1995, 1
        %v1997 = vadd.f32 %v1995, %v1996
        %v1998 = vadd.f32 %v1974, %v1978
        %v1999 = vadd.f32 %v1998, %v1982
        %v2000 = vadd.f32 %v1999, %v1986
        %v2001 = vrot.slane %v2000, 4
        %v2002 = vadd.f32 %v2000, %v2001
        %v2003 = vrot.slane %v2002, 2
        %v2004 = vadd.f32 %v2002, %v2003
        %v2005 = vrot.slane %v2004, 1
        %v2006 = vadd.f32 %v2004, %v2005
        %v2007 = vadd.f32 %v1975, %v1979
        %v2008 = vadd.f32 %v2007, %v1983
        %v2009 = vadd.f32 %v2008, %v1987
        %v2010 = vrot.slane %v2009, 4
        %v2011 = vadd.f32 %v2009, %v2010
        %v2012 = vrot.slane %v2011, 2
        %v2013 = vadd.f32 %v2011, %v2012
        %v2014 = vrot.slane %v2013, 1
        %v2015 = vadd.f32 %v2013, %v2014
        %v2016 = vadd.f32 %v1976, %v1980
        %v2017 = vadd.f32 %v2016, %v1984
        %v2018 = vadd.f32 %v2017, %v1988
        %v2019 = vrot.slane %v2018, 4
        %v2020 = vadd.f32 %v2018, %v2019
        %v2021 = vrot.slane %v2020, 2
        %v2022 = vadd.f32 %v2020, %v2021
        %v2023 = vrot.slane %v2022, 1
        %v2024 = vadd.f32 %v2022, %v2023
        %v2025 = vadd.f32 %v1997, %v1272
        %v2026 = vadd.f32 %v2006, %v1272
        %v2027 = vadd.f32 %v2015, %v1272
        %v2028 = vadd.f32 %v2024, %v1272
        %v2029 = vtanh.pop %v2025
        %v2030 = vtanh.pop %v2026
        %v2031 = vtanh.pop %v2027
        %v2032 = vtanh.pop %v2028
        %v2037 = vrot.slane %v2030, 7
        %v2038 = vrot.slane %v2031, 6
        %v2039 = vrot.slane %v2032, 5
        %v2040 = vsel %vm1288, %v2029, %v2037
        %v2041 = vsel %vm1290, %v2038, %v2039
        %v2042 = vsel %vm1292, %v2040, %v2041
        %s2044 = scalar_lea.vmem %s355, 4 [#allocation3]
        %2045 = vst.msk [vmem:[%s2044] sm:$0xf] %vm1298, %v2042
        %s2046 = sand.u32 %s249, 1
        %s2047 = scalar_lea.sflag [#allocation4], %s2046
        %s2048 = sand.u32 %s249, 1
        %s2049 = smul.addr %s2048, 8
        %s2050 = scalar_lea.vmem [#allocation3], %s2049
        // Predicated region
        $region61: #{tpu_custom_call.1} parent=59 // pred_check
          %p2051 = pneg %p259
        $region62: #{tpu_custom_call.1} parent=59 // pred_check_branch
          %2053 = sbr.rel (%p2051) target = $region64
        $region63: #{tpu_custom_call.1} parent=59 // pred_region
          %s2054 = smul.u32 8, %s26
          %2056 = vsyncadd %s2047, 0
          %s2057 = scalar_lea.hbm %s10, %s2054
          %s2059 = sshll.u32 %s2050, 4
          %s2060 = int_to_ptr.vmem [resolvable:$true] %s2059
          %s2061 = sshll.u32 %s2057, 4
          %s2062 = int_to_ptr.hbm [resolvable:$true] %s2061
          %2064 = dma.vmem_to_hbm [thread:$0]  %s2060, 128, %s2062, %s2047
        $region64: #{tpu_custom_call.1} parent=59 // pred_fallthru
          _
      $region60: #{tpu_custom_call.1} parent=5 // pred_fallthru
        _
      %p2065 = scmp.le.s32.totalorder 2, %s21
      // Predicated region
      $region65: #{tpu_custom_call.1} parent=5 // pred_check
        %p2066 = pneg %p2065
      $region66: #{tpu_custom_call.1} parent=5 // pred_check_branch
        %2068 = sbr.rel (%p2066) target = $region68
      $region67: #{tpu_custom_call.1} parent=5 // pred_region
        %s2069 = ssub.s32 %s21, 2
        // Predicated region
        $region69: #{tpu_custom_call.1} parent=67 // pred_check
          %p2070 = pneg %p265
        $region70: #{tpu_custom_call.1} parent=67 // pred_check_branch
          %2072 = sbr.rel (%p2070) target = $region72
        $region71: #{tpu_custom_call.1} parent=67 // pred_region
          %s2073 = sand.u32 %s250, 1
          %s2074 = scalar_lea.sflag [#allocation4], %s2073
          %s2075 = sand.u32 %s250, 1
          %s2076 = smul.addr %s2075, 8
          %s2077 = scalar_lea.vmem [#allocation3], %s2076
          %2079 = dma.done %s2074, 128
        $region72: #{tpu_custom_call.1} parent=67 // pred_fallthru
          _
      $region68: #{tpu_custom_call.1} parent=5 // pred_fallthru
        _
    $region6: #{tpu_custom_call.1} parent=1 // loop_footer
      %s25 = sadd.s32 1, %s21
    $region7: #{tpu_custom_call.1} parent=1 // loop_footer_branch
      %20 = sbr.rel target = $region3
    $region8: #{tpu_custom_call.1} parent=1 // loop_exit
      _
    %2080 = vsyncpa [#allocation4], 1
    %s2081 = scalar_lea.sflag [#allocation4], 1
    %2082 = vsyncpa %s2081, 1

</llo_original>
